<compile_context>
chip_gen: v7x
topology: tpu7x:2x2x1
jax: 0.10.0
libtpu: 0.0.40
codegen_flags: <defaults>
</compile_context>

<pallas_src>
import functools

import jax
import jax.numpy as jnp
from jax.experimental import pallas as pl
from jax.experimental.pallas import tpu as pltpu


# ----------------------------------------------------------------------------
# model configuration (static; arrays live in the params pytree)
# ----------------------------------------------------------------------------
IN_CH = 3
BACKBONE_CH = (16, 32)
DECODER_CH = 32
NUM_CLASSES = 5
ASPP_RATES = (1, 2)
# TODO(synk): classic DeepLab-v2 ASPP sums dilated branches WITHOUT a post-sum
# ReLU; build_decoder in the reference cfg is unspecified, so this is a flag.
ASPP_POST_RELU = False


def _round_up(x, m):
    return (x + m - 1) // m * m


def _pick_tk(K_pad):
    """Largest 128-multiple tile that divides K_pad (never inflates K padding)."""
    for cand in (512, 384, 256, 128):
        if K_pad % cand == 0:
            return cand
    return 128


def _pick_tm(M_pad, cap=512):
    """Multiple-of-8 M tile; prefer >=2 blocks so megacore has work for 2 TCs."""
    if M_pad <= 16:
        return M_pad
    tm = min(cap, M_pad)
    if M_pad // tm < 2:
        tm = _round_up((M_pad + 1) // 2, 8)
    return tm


def _pick_tn(N_pad):
    # 256 fills the 256-wide MXU on v6e/v7x; for N_pad == 128 (this model) and
    # on v5e (128-wide MXU) this stays at 128.
    return 256 if N_pad % 256 == 0 else 128


# ----------------------------------------------------------------------------
# Pallas kernel 1: tiled  out = act(patches @ W + b)  with f32 VMEM accumulator
# ----------------------------------------------------------------------------
def _gemm_bias_act_kernel(x_ref, w_ref, b_ref, o_ref, acc_ref, *, relu):
    @pl.when(pl.program_id(2) == 0)
    def _init():
        acc_ref[...] = jnp.zeros_like(acc_ref)

    # bf16 x bf16 -> f32 accumulate on the MXU.
    acc_ref[...] += jnp.dot(x_ref[...], w_ref[...],
                            preferred_element_type=jnp.float32)

    @pl.when(pl.program_id(2) == pl.num_programs(2) - 1)
    def _finalize():
        out = acc_ref[...] + b_ref[...]          # bias exactly once (finalize)
        if relu:
            out = jnp.maximum(out, 0.0)
        o_ref[...] = out.astype(o_ref.dtype)     # bf16 for intermediates


def gemm_bias_act(x, w_p, b_p, *, relu, out_dtype):
    """x: (M, K) bf16 patches; w_p: (K_pad, N_pad) bf16; b_p: (1, N_pad) f32.

    Weights arrive pre-padded/pre-cast (init-time).  Pads M/K of the patches to
    the weight's padded K and runs a tiled, pipelined Pallas GEMM.
    Returns (M, N_pad) in `out_dtype` (caller slices the valid N columns).
    """
    M, K = x.shape
    K_pad, N_pad = w_p.shape

    M_pad = _round_up(M, 8)
    tm = _pick_tm(M_pad)
    M_pad = _round_up(M_pad, tm)
    tk = _pick_tk(K_pad)
    tn = _pick_tn(N_pad)
    grid = (M_pad // tm, N_pad // tn, K_pad // tk)

    x_p = x.astype(jnp.bfloat16)
    if (M_pad - M) or (K_pad - K):
        x_p = jnp.pad(x_p, ((0, M_pad - M), (0, K_pad - K)))

    out_isz = jnp.dtype(out_dtype).itemsize
    cost = pl.CostEstimate(
        flops=2 * M_pad * K_pad * N_pad,
        transcendentals=0,
        bytes_accessed=(M_pad * K_pad * 2 + K_pad * N_pad * 2
                        + N_pad * 4 + M_pad * N_pad * out_isz),
    )

    out = pl.pallas_call(
        functools.partial(_gemm_bias_act_kernel, relu=relu),
        out_shape=jax.ShapeDtypeStruct((M_pad, N_pad), out_dtype),
        grid_spec=pltpu.PrefetchScalarGridSpec(
            num_scalar_prefetch=0,
            grid=grid,
            in_specs=[
                pl.BlockSpec((tm, tk), lambda i, j, k: (i, k)),
                pl.BlockSpec((tk, tn), lambda i, j, k: (k, j)),
                pl.BlockSpec((1, tn), lambda i, j, k: (0, j)),
            ],
            out_specs=pl.BlockSpec((tm, tn), lambda i, j, k: (i, j)),
            scratch_shapes=[pltpu.VMEM((tm, tn), jnp.float32)],
        ),
        compiler_params=pltpu.CompilerParams(
            dimension_semantics=("parallel", "parallel", "arbitrary"),
            vmem_limit_bytes=32 * 1024 * 1024,
        ),
        cost_estimate=cost,
    )(x_p, w_p, b_p)

    return out[:M]


# ----------------------------------------------------------------------------
# Pallas kernel 2: fused ASPP + 1x1 predictor
#   logits = act(patches @ W_aspp + b_aspp) @ W_pred + b_pred
# ----------------------------------------------------------------------------
def _aspp_pred_kernel(x_ref, w_ref, b_ref, wp_ref, bp_ref, o_ref, acc_ref, *, relu):
    @pl.when(pl.program_id(1) == 0)
    def _init():
        acc_ref[...] = jnp.zeros_like(acc_ref)

    acc_ref[...] += jnp.dot(x_ref[...], w_ref[...],
                            preferred_element_type=jnp.float32)

    @pl.when(pl.program_id(1) == pl.num_programs(1) - 1)
    def _finalize():
        dec = acc_ref[...] + b_ref[...]               # ASPP branch-sum + bias
        if relu:
            dec = jnp.maximum(dec, 0.0)
        # 1x1 predictor: second MXU matmul, VMEM-resident weights.
        out = jnp.dot(dec.astype(wp_ref.dtype), wp_ref[...],
                      preferred_element_type=jnp.float32) + bp_ref[...]
        o_ref[...] = out.astype(o_ref.dtype)


def aspp_predictor_fused(f_nhwc, aspp_w, aspp_b, pred_w, pred_b, *,
                         rates, n_classes, relu):
    """DeepLab-v2 ASPP (sum of dilated 3x3 branches) + 1x1 predictor in ONE call.

    Per-rate im2col patches are concatenated along K and per-rate weights were
    pre-stacked along K at init, so the branch sum happens inside the K loop;
    the predictor matmul runs in the finalize block — no decoder-feature HBM
    round trip.
    """
    N = f_nhwc.shape[0]
    f_bf16 = f_nhwc.astype(jnp.bfloat16)
    patch_list = []
    Ho = Wo = None
    for rate in rates:
        p, Ho, Wo = _im2col(f_bf16, 3, 3, 1, rate, rate)
        patch_list.append(p)
    patches = jnp.concatenate(patch_list, axis=1)     # (M, R*9*Cin) bf16

    M, K = patches.shape
    K_pad, D_pad = aspp_w.shape                        # pre-padded at init
    D_pad2, C_pad = pred_w.shape
    assert D_pad == D_pad2
    assert D_pad <= 512 and C_pad <= 512               # single resident N tile

    M_pad = _round_up(M, 8)
    tm = _pick_tm(M_pad)
    M_pad = _round_up(M_pad, tm)
    tk = _pick_tk(K_pad)
    grid = (M_pad // tm, K_pad // tk)

    x_p = patches
    if (M_pad - M) or (K_pad - K):
        x_p = jnp.pad(patches, ((0, M_pad - M), (0, K_pad - K)))

    cost = pl.CostEstimate(
        flops=2 * M_pad * K_pad * D_pad + 2 * M_pad * D_pad * C_pad,
        transcendentals=0,
        bytes_accessed=(M_pad * K_pad * 2 + K_pad * D_pad * 2 + D_pad * C_pad * 2
                        + (D_pad + C_pad) * 4 + M_pad * C_pad * 4),
    )

    out = pl.pallas_call(
        functools.partial(_aspp_pred_kernel, relu=relu),
        out_shape=jax.ShapeDtypeStruct((M_pad, C_pad), jnp.float32),
        grid_spec=pltpu.PrefetchScalarGridSpec(
            num_scalar_prefetch=0,
            grid=grid,
            in_specs=[
                pl.BlockSpec((tm, tk), lambda i, k: (i, k)),
                pl.BlockSpec((tk, D_pad), lambda i, k: (k, 0)),
                pl.BlockSpec((1, D_pad), lambda i, k: (0, 0)),
                pl.BlockSpec((D_pad, C_pad), lambda i, k: (0, 0)),
                pl.BlockSpec((1, C_pad), lambda i, k: (0, 0)),
            ],
            out_specs=pl.BlockSpec((tm, C_pad), lambda i, k: (i, 0)),
            scratch_shapes=[pltpu.VMEM((tm, D_pad), jnp.float32)],
        ),
        compiler_params=pltpu.CompilerParams(
            dimension_semantics=("parallel", "arbitrary"),
            vmem_limit_bytes=32 * 1024 * 1024,
        ),
        cost_estimate=cost,
    )(x_p, aspp_w, aspp_b, pred_w, pred_b)

    return out[:M, :n_classes].reshape(N, Ho, Wo, n_classes)


# ----------------------------------------------------------------------------
# Conv = im2col (glue) + Pallas GEMM (hot path)
# ----------------------------------------------------------------------------
# TODO(synk): the kh*kw tap expansion is still materialized by im2col (now in
# bf16); doing the 9-tap expansion inside the kernel (tap axis on the K grid
# with shifted activation index_map) would remove the activation read
# amplification entirely.
def _im2col(x_nhwc, kh, kw, stride, dilation, padding):
    N, H, W, C = x_nhwc.shape
    xp = jnp.pad(x_nhwc, ((0, 0), (padding, padding), (padding, padding), (0, 0)))
    Ho = (H + 2 * padding - dilation * (kh - 1) - 1) // stride + 1
    Wo = (W + 2 * padding - dilation * (kw - 1) - 1) // stride + 1
    cols = []
    for i in range(kh):
        for j in range(kw):
            patch = xp[:, i * dilation: i * dilation + stride * (Ho - 1) + 1: stride,
                          j * dilation: j * dilation + stride * (Wo - 1) + 1: stride, :]
            cols.append(patch)
    patches = jnp.concatenate(cols, axis=-1)          # (N, Ho, Wo, kh*kw*C) bf16
    return patches.reshape(N * Ho * Wo, kh * kw * C), Ho, Wo


def conv2d(x_nhwc, w_p, b_p, *, kh, kw, cout, stride=1, dilation=1, padding=0,
           relu=False, out_dtype=jnp.bfloat16):
    """x: (N,H,W,Cin) bf16; w_p/b_p: init-prepped GEMM operands. -> (N,Ho,Wo,cout)."""
    N = x_nhwc.shape[0]
    patches, Ho, Wo = _im2col(x_nhwc, kh, kw, stride, dilation, padding)
    out = gemm_bias_act(patches, w_p, b_p, relu=relu, out_dtype=out_dtype)
    return out[:, :cout].reshape(N, Ho, Wo, cout)


# ----------------------------------------------------------------------------
# Parameter init: weights reshaped / padded / bf16-cast ONCE here
# ----------------------------------------------------------------------------
def init_params(key):
    keys = jax.random.split(key, 8)

    def he(shape, kk):
        fan_in = shape[0] * shape[1] * shape[2]
        return jax.random.normal(kk, shape, jnp.float32) / jnp.sqrt(fan_in)

    def prep(w_hwio, b):
        kh, kw, cin, cout = w_hwio.shape
        K, Nc = kh * kw * cin, cout
        K_pad, N_pad = _round_up(K, 128), _round_up(Nc, 128)
        w2d = jnp.pad(w_hwio.reshape(K, Nc),
                      ((0, K_pad - K), (0, N_pad - Nc))).astype(jnp.bfloat16)
        b2d = jnp.pad(b, (0, N_pad - Nc)).astype(jnp.float32).reshape(1, N_pad)
        return w2d, b2d

    params = {}
    # backbone: two 3x3 stride-2 convs with ReLU
    params["bb1_w"], params["bb1_b"] = prep(
        he((3, 3, IN_CH, BACKBONE_CH[0]), keys[0]),
        jnp.zeros((BACKBONE_CH[0],), jnp.float32))
    params["bb2_w"], params["bb2_b"] = prep(
        he((3, 3, BACKBONE_CH[0], BACKBONE_CH[1]), keys[1]),
        jnp.zeros((BACKBONE_CH[1],), jnp.float32))

    # decoder (ASPP): per-rate 3x3 dilated weights pre-stacked along K, biases pre-summed
    cin = BACKBONE_CH[1]
    w_list = []
    b_sum = jnp.zeros((DECODER_CH,), jnp.float32)
    for kk in jax.random.split(keys[2], len(ASPP_RATES)):
        wr = he((3, 3, cin, DECODER_CH), kk)
        w_list.append(wr.reshape(9 * cin, DECODER_CH))
        b_sum = b_sum + jnp.zeros((DECODER_CH,), jnp.float32)   # per-branch bias
    K = len(ASPP_RATES) * 9 * cin
    K_pad, D_pad = _round_up(K, 128), _round_up(DECODER_CH, 128)
    aspp_w = jnp.concatenate(w_list, axis=0)                    # (R*9*Cin, D)
    params["aspp_w"] = jnp.pad(
        aspp_w, ((0, K_pad - K), (0, D_pad - DECODER_CH))).astype(jnp.bfloat16)
    params["aspp_b"] = jnp.pad(b_sum, (0, D_pad - DECODER_CH)).reshape(1, D_pad)

    # predictor: 1x1 conv to num_classes (fused into the ASPP kernel epilogue)
    C_pad = _round_up(NUM_CLASSES, 128)
    wp = he((1, 1, DECODER_CH, NUM_CLASSES), keys[3]).reshape(DECODER_CH, NUM_CLASSES)
    params["pred_w"] = jnp.pad(
        wp, ((0, D_pad - DECODER_CH), (0, C_pad - NUM_CLASSES))).astype(jnp.bfloat16)
    params["pred_b"] = jnp.pad(
        jnp.zeros((NUM_CLASSES,), jnp.float32), (0, C_pad - NUM_CLASSES)).reshape(1, C_pad)
    return params


# ----------------------------------------------------------------------------
# GeneralizedSegmentor forward (inference path: returns logits)
# ----------------------------------------------------------------------------
def generalized_segmentor_forward(params, images_nchw):
    """images: (N, C, H, W) float32  ->  logits: (N, num_classes, H, W) float32."""
    N, C, H, W = images_nchw.shape
    x = jnp.transpose(images_nchw, (0, 2, 3, 1)).astype(jnp.bfloat16)   # NHWC bf16

    # backbone: two stride-2 3x3 convs, bias+ReLU fused in the GEMM epilogue,
    # bf16 intermediates (half the writeback / next-layer read bytes)
    f = conv2d(x, params["bb1_w"], params["bb1_b"],
               kh=3, kw=3, cout=BACKBONE_CH[0],
               stride=2, padding=1, relu=True, out_dtype=jnp.bfloat16)
    f = conv2d(f, params["bb2_w"], params["bb2_b"],
               kh=3, kw=3, cout=BACKBONE_CH[1],
               stride=2, padding=1, relu=True, out_dtype=jnp.bfloat16)

    # decoder (ASPP branch-sum) + 1x1 predictor fused into ONE pallas_call
    logits = aspp_predictor_fused(
        f, params["aspp_w"], params["aspp_b"], params["pred_w"], params["pred_b"],
        rates=ASPP_RATES, n_classes=NUM_CLASSES, relu=ASPP_POST_RELU)

    # TODO(synk): jax.image.resize(bilinear) == align_corners=False; if the
    # reference predictor uses F.interpolate(align_corners=True), borders differ.
    logits = jax.image.resize(logits, (N, H, W, NUM_CLASSES), method="bilinear")

    return jnp.transpose(logits, (0, 3, 1, 2)).astype(jnp.float32)      # NCHW

    # TODO(synk): training branch (mask_loss) not implemented — forward in eval
    # mode returns logits only, matching the PyTorch module's inference path.


if __name__ == "__main__":
    key = jax.random.PRNGKey(0)
    k_img, k_par = jax.random.split(key)

    images = jax.random.normal(k_img, (2, IN_CH, 16, 16), jnp.float32)   # NCHW
    params = init_params(k_par)

    fwd = jax.jit(generalized_segmentor_forward)
    logits = fwd(params, images)
    jax.block_until_ready(logits)

    assert logits.shape == (2, NUM_CLASSES, 16, 16), logits.shape
    assert logits.dtype == jnp.float32
    assert bool(jnp.all(jnp.isfinite(logits)))
    print("KERNEL_OK")
</pallas_src>

<mosaic_0001>
module attributes {stable_mosaic.version = 11 : i64} {
  func.func @_gemm_bias_act_kernel(%arg0: i32, %arg1: i32, %arg2: i32, %arg3: memref<64x128xbf16, #tpu.memory_space<vmem>>, %arg4: memref<128x128xbf16, #tpu.memory_space<vmem>>, %arg5: memref<1x128xf32, #tpu.memory_space<vmem>>, %arg6: memref<64x128xbf16, #tpu.memory_space<vmem>>, %arg7: memref<64x128xf32, #tpu.memory_space<vmem>>) attributes {dimension_semantics = [#tpu.dimension_semantics<parallel>, #tpu.dimension_semantics<parallel>, #tpu.dimension_semantics<arbitrary>], iteration_bounds = array<i64: 2, 1, 1>, scalar_prefetch = 0 : i64, scratch_operands = 1 : i64, tpu.core_type = #tpu.core_type<tc>, window_params = [{transform_indices = @transform_0, window_bounds = array<i64: 64, 128>}, {transform_indices = @transform_1, window_bounds = array<i64: 128, 128>}, {transform_indices = @transform_2, window_bounds = array<i64: 1, 128>}, {transform_indices = @transform_3, window_bounds = array<i64: 64, 128>}]} {
    %c0_i32 = arith.constant 0 : i32
    %0 = arith.cmpi eq, %arg2, %c0_i32 : i32
    %1 = arith.extui %0 : i1 to i32
    %c0_i32_0 = arith.constant 0 : i32
    %2 = arith.cmpi ne, %1, %c0_i32_0 : i32
    scf.if %2 {
      %cst_10 = arith.constant 0.000000e+00 : f32
      %12 = vector.broadcast %cst_10 : f32 to vector<64x128xf32>
      %c0_11 = arith.constant 0 : index
      %c0_12 = arith.constant 0 : index
      %13 = vector.load %arg7[%c0_11, %c0_12] : memref<64x128xf32, #tpu.memory_space<vmem>>, vector<64x128xf32>
      tpu.vector_store %arg7[%c0_11, %c0_12], %12 {strides = array<i32>} : memref<64x128xf32, #tpu.memory_space<vmem>>, vector<64x128xf32>,
    } else {
    }
    %c0 = arith.constant 0 : index
    %c0_1 = arith.constant 0 : index
    %3 = vector.load %arg7[%c0, %c0_1] : memref<64x128xf32, #tpu.memory_space<vmem>>, vector<64x128xf32>
    %c0_2 = arith.constant 0 : index
    %c0_3 = arith.constant 0 : index
    %4 = vector.load %arg3[%c0_2, %c0_3] : memref<64x128xbf16, #tpu.memory_space<vmem>>, vector<64x128xbf16>
    %c0_4 = arith.constant 0 : index
    %c0_5 = arith.constant 0 : index
    %5 = vector.load %arg4[%c0_4, %c0_5] : memref<128x128xbf16, #tpu.memory_space<vmem>>, vector<128x128xbf16>
    %cst = arith.constant dense<0.000000e+00> : vector<64x128xf32>
    %6 = tpu.matmul %4, %5, %cst {dimension_numbers = #tpu.dot_dimension_numbers<[1], [0], [0], [1], [0, 0, 1, 1], [], []>} : vector<64x128xbf16>, vector<128x128xbf16>, vector<64x128xf32> -> vector<64x128xf32>
    %7 = arith.addf %3, %6 : vector<64x128xf32>
    %c0_6 = arith.constant 0 : index
    %c0_7 = arith.constant 0 : index
    %8 = vector.load %arg7[%c0_6, %c0_7] : memref<64x128xf32, #tpu.memory_space<vmem>>, vector<64x128xf32>
    tpu.vector_store %arg7[%c0_6, %c0_7], %7 {strides = array<i32>} : memref<64x128xf32, #tpu.memory_space<vmem>>, vector<64x128xf32>,
    %c0_i32_8 = arith.constant 0 : i32
    %9 = arith.cmpi eq, %arg2, %c0_i32_8 : i32
    %10 = arith.extui %9 : i1 to i32
    %c0_i32_9 = arith.constant 0 : i32
    %11 = arith.cmpi ne, %10, %c0_i32_9 : i32
    scf.if %11 {
      %c0_10 = arith.constant 0 : index
      %c0_11 = arith.constant 0 : index
      %12 = vector.load %arg7[%c0_10, %c0_11] : memref<64x128xf32, #tpu.memory_space<vmem>>, vector<64x128xf32>
      %c0_12 = arith.constant 0 : index
      %c0_13 = arith.constant 0 : index
      %13 = vector.load %arg5[%c0_12, %c0_13] : memref<1x128xf32, #tpu.memory_space<vmem>>, vector<1x128xf32>
      %14 = vector.broadcast %13 : vector<1x128xf32> to vector<64x128xf32>
      %15 = arith.addf %12, %14 : vector<64x128xf32>
      %cst_14 = arith.constant 0.000000e+00 : f32
      %16 = vector.broadcast %cst_14 : f32 to vector<64x128xf32>
      %17 = arith.maximumf %15, %16 : vector<64x128xf32>
      %18 = arith.truncf %17 : vector<64x128xf32> to vector<64x128xbf16>
      %c0_15 = arith.constant 0 : index
      %c0_16 = arith.constant 0 : index
      %19 = vector.load %arg6[%c0_15, %c0_16] : memref<64x128xbf16, #tpu.memory_space<vmem>>, vector<64x128xbf16>
      tpu.vector_store %arg6[%c0_15, %c0_16], %18 {strides = array<i32>} : memref<64x128xbf16, #tpu.memory_space<vmem>>, vector<64x128xbf16>,
    } else {
    }
    return
  }
  func.func @transform_0(%arg0: i32, %arg1: i32, %arg2: i32) -> (i32, i32) {
    %c0_i32 = arith.constant 0 : i32
    return %arg0, %arg2 : i32, i32
  }
  func.func @transform_1(%arg0: i32, %arg1: i32, %arg2: i32) -> (i32, i32) {
    %c0_i32 = arith.constant 0 : i32
    return %arg2, %arg1 : i32, i32
  }
  func.func @transform_2(%arg0: i32, %arg1: i32, %arg2: i32) -> (i32, i32) {
    %c0_i32 = arith.constant 0 : i32
    %c0_i32_0 = arith.constant 0 : i32
    return %c0_i32, %arg1 : i32, i32
  }
  func.func @transform_3(%arg0: i32, %arg1: i32, %arg2: i32) -> (i32, i32) {
    %c0_i32 = arith.constant 0 : i32
    return %arg0, %arg1 : i32, i32
  }
}

module attributes {stable_mosaic.version = 11 : i64} {
  func.func @_gemm_bias_act_kernel(%arg0: i32, %arg1: i32, %arg2: i32, %arg3: memref<16x256xbf16, #tpu.memory_space<vmem>>, %arg4: memref<256x128xbf16, #tpu.memory_space<vmem>>, %arg5: memref<1x128xf32, #tpu.memory_space<vmem>>, %arg6: memref<16x128xbf16, #tpu.memory_space<vmem>>, %arg7: memref<16x128xf32, #tpu.memory_space<vmem>>) attributes {dimension_semantics = [#tpu.dimension_semantics<parallel>, #tpu.dimension_semantics<parallel>, #tpu.dimension_semantics<arbitrary>], iteration_bounds = array<i64: 2, 1, 1>, scalar_prefetch = 0 : i64, scratch_operands = 1 : i64, tpu.core_type = #tpu.core_type<tc>, window_params = [{transform_indices = @transform_0, window_bounds = array<i64: 16, 256>}, {transform_indices = @transform_1, window_bounds = array<i64: 256, 128>}, {transform_indices = @transform_2, window_bounds = array<i64: 1, 128>}, {transform_indices = @transform_3, window_bounds = array<i64: 16, 128>}]} {
    %c0_i32 = arith.constant 0 : i32
    %0 = arith.cmpi eq, %arg2, %c0_i32 : i32
    %1 = arith.extui %0 : i1 to i32
    %c0_i32_0 = arith.constant 0 : i32
    %2 = arith.cmpi ne, %1, %c0_i32_0 : i32
    scf.if %2 {
      %cst_10 = arith.constant 0.000000e+00 : f32
      %12 = vector.broadcast %cst_10 : f32 to vector<16x128xf32>
      %c0_11 = arith.constant 0 : index
      %c0_12 = arith.constant 0 : index
      %13 = vector.load %arg7[%c0_11, %c0_12] : memref<16x128xf32, #tpu.memory_space<vmem>>, vector<16x128xf32>
      tpu.vector_store %arg7[%c0_11, %c0_12], %12 {strides = array<i32>} : memref<16x128xf32, #tpu.memory_space<vmem>>, vector<16x128xf32>,
    } else {
    }
    %c0 = arith.constant 0 : index
    %c0_1 = arith.constant 0 : index
    %3 = vector.load %arg7[%c0, %c0_1] : memref<16x128xf32, #tpu.memory_space<vmem>>, vector<16x128xf32>
    %c0_2 = arith.constant 0 : index
    %c0_3 = arith.constant 0 : index
    %4 = vector.load %arg3[%c0_2, %c0_3] : memref<16x256xbf16, #tpu.memory_space<vmem>>, vector<16x256xbf16>
    %c0_4 = arith.constant 0 : index
    %c0_5 = arith.constant 0 : index
    %5 = vector.load %arg4[%c0_4, %c0_5] : memref<256x128xbf16, #tpu.memory_space<vmem>>, vector<256x128xbf16>
    %cst = arith.constant dense<0.000000e+00> : vector<16x128xf32>
    %6 = tpu.matmul %4, %5, %cst {dimension_numbers = #tpu.dot_dimension_numbers<[1], [0], [0], [1], [0, 0, 1, 1], [], []>} : vector<16x256xbf16>, vector<256x128xbf16>, vector<16x128xf32> -> vector<16x128xf32>
    %7 = arith.addf %3, %6 : vector<16x128xf32>
    %c0_6 = arith.constant 0 : index
    %c0_7 = arith.constant 0 : index
    %8 = vector.load %arg7[%c0_6, %c0_7] : memref<16x128xf32, #tpu.memory_space<vmem>>, vector<16x128xf32>
    tpu.vector_store %arg7[%c0_6, %c0_7], %7 {strides = array<i32>} : memref<16x128xf32, #tpu.memory_space<vmem>>, vector<16x128xf32>,
    %c0_i32_8 = arith.constant 0 : i32
    %9 = arith.cmpi eq, %arg2, %c0_i32_8 : i32
    %10 = arith.extui %9 : i1 to i32
    %c0_i32_9 = arith.constant 0 : i32
    %11 = arith.cmpi ne, %10, %c0_i32_9 : i32
    scf.if %11 {
      %c0_10 = arith.constant 0 : index
      %c0_11 = arith.constant 0 : index
      %12 = vector.load %arg7[%c0_10, %c0_11] : memref<16x128xf32, #tpu.memory_space<vmem>>, vector<16x128xf32>
      %c0_12 = arith.constant 0 : index
      %c0_13 = arith.constant 0 : index
      %13 = vector.load %arg5[%c0_12, %c0_13] : memref<1x128xf32, #tpu.memory_space<vmem>>, vector<1x128xf32>
      %14 = vector.broadcast %13 : vector<1x128xf32> to vector<16x128xf32>
      %15 = arith.addf %12, %14 : vector<16x128xf32>
      %cst_14 = arith.constant 0.000000e+00 : f32
      %16 = vector.broadcast %cst_14 : f32 to vector<16x128xf32>
      %17 = arith.maximumf %15, %16 : vector<16x128xf32>
      %18 = arith.truncf %17 : vector<16x128xf32> to vector<16x128xbf16>
      %c0_15 = arith.constant 0 : index
      %c0_16 = arith.constant 0 : index
      %19 = vector.load %arg6[%c0_15, %c0_16] : memref<16x128xbf16, #tpu.memory_space<vmem>>, vector<16x128xbf16>
      tpu.vector_store %arg6[%c0_15, %c0_16], %18 {strides = array<i32>} : memref<16x128xbf16, #tpu.memory_space<vmem>>, vector<16x128xbf16>,
    } else {
    }
    return
  }
  func.func @transform_0(%arg0: i32, %arg1: i32, %arg2: i32) -> (i32, i32) {
    %c0_i32 = arith.constant 0 : i32
    return %arg0, %arg2 : i32, i32
  }
  func.func @transform_1(%arg0: i32, %arg1: i32, %arg2: i32) -> (i32, i32) {
    %c0_i32 = arith.constant 0 : i32
    return %arg2, %arg1 : i32, i32
  }
  func.func @transform_2(%arg0: i32, %arg1: i32, %arg2: i32) -> (i32, i32) {
    %c0_i32 = arith.constant 0 : i32
    %c0_i32_0 = arith.constant 0 : i32
    return %c0_i32, %arg1 : i32, i32
  }
  func.func @transform_3(%arg0: i32, %arg1: i32, %arg2: i32) -> (i32, i32) {
    %c0_i32 = arith.constant 0 : i32
    return %arg0, %arg1 : i32, i32
  }
}

module attributes {stable_mosaic.version = 11 : i64} {
  func.func @_aspp_pred_kernel(%arg0: i32, %arg1: i32, %arg2: memref<16x128xbf16, #tpu.memory_space<vmem>>, %arg3: memref<128x128xbf16, #tpu.memory_space<vmem>>, %arg4: memref<1x128xf32, #tpu.memory_space<vmem>>, %arg5: memref<128x128xbf16, #tpu.memory_space<vmem>>, %arg6: memref<1x128xf32, #tpu.memory_space<vmem>>, %arg7: memref<16x128xf32, #tpu.memory_space<vmem>>, %arg8: memref<16x128xf32, #tpu.memory_space<vmem>>) attributes {dimension_semantics = [#tpu.dimension_semantics<parallel>, #tpu.dimension_semantics<arbitrary>], iteration_bounds = array<i64: 2, 5>, scalar_prefetch = 0 : i64, scratch_operands = 1 : i64, tpu.core_type = #tpu.core_type<tc>, window_params = [{transform_indices = @transform_0, window_bounds = array<i64: 16, 128>}, {transform_indices = @transform_1, window_bounds = array<i64: 128, 128>}, {pipeline_mode = #tpu.pipeline_mode<synchronous>, transform_indices = @transform_2, window_bounds = array<i64: 1, 128>}, {pipeline_mode = #tpu.pipeline_mode<synchronous>, transform_indices = @transform_3, window_bounds = array<i64: 128, 128>}, {pipeline_mode = #tpu.pipeline_mode<synchronous>, transform_indices = @transform_4, window_bounds = array<i64: 1, 128>}, {transform_indices = @transform_5, window_bounds = array<i64: 16, 128>}]} {
    %c0_i32 = arith.constant 0 : i32
    %0 = arith.cmpi eq, %arg1, %c0_i32 : i32
    %1 = arith.extui %0 : i1 to i32
    %c0_i32_0 = arith.constant 0 : i32
    %2 = arith.cmpi ne, %1, %c0_i32_0 : i32
    scf.if %2 {
      %cst_9 = arith.constant 0.000000e+00 : f32
      %12 = vector.broadcast %cst_9 : f32 to vector<16x128xf32>
      %c0_10 = arith.constant 0 : index
      %c0_11 = arith.constant 0 : index
      %13 = vector.load %arg8[%c0_10, %c0_11] : memref<16x128xf32, #tpu.memory_space<vmem>>, vector<16x128xf32>
      tpu.vector_store %arg8[%c0_10, %c0_11], %12 {strides = array<i32>} : memref<16x128xf32, #tpu.memory_space<vmem>>, vector<16x128xf32>,
    } else {
    }
    %c0 = arith.constant 0 : index
    %c0_1 = arith.constant 0 : index
    %3 = vector.load %arg8[%c0, %c0_1] : memref<16x128xf32, #tpu.memory_space<vmem>>, vector<16x128xf32>
    %c0_2 = arith.constant 0 : index
    %c0_3 = arith.constant 0 : index
    %4 = vector.load %arg2[%c0_2, %c0_3] : memref<16x128xbf16, #tpu.memory_space<vmem>>, vector<16x128xbf16>
    %c0_4 = arith.constant 0 : index
    %c0_5 = arith.constant 0 : index
    %5 = vector.load %arg3[%c0_4, %c0_5] : memref<128x128xbf16, #tpu.memory_space<vmem>>, vector<128x128xbf16>
    %cst = arith.constant dense<0.000000e+00> : vector<16x128xf32>
    %6 = tpu.matmul %4, %5, %cst {dimension_numbers = #tpu.dot_dimension_numbers<[1], [0], [0], [1], [0, 0, 1, 1], [], []>} : vector<16x128xbf16>, vector<128x128xbf16>, vector<16x128xf32> -> vector<16x128xf32>
    %7 = arith.addf %3, %6 : vector<16x128xf32>
    %c0_6 = arith.constant 0 : index
    %c0_7 = arith.constant 0 : index
    %8 = vector.load %arg8[%c0_6, %c0_7] : memref<16x128xf32, #tpu.memory_space<vmem>>, vector<16x128xf32>
    tpu.vector_store %arg8[%c0_6, %c0_7], %7 {strides = array<i32>} : memref<16x128xf32, #tpu.memory_space<vmem>>, vector<16x128xf32>,
    %c4_i32 = arith.constant 4 : i32
    %9 = arith.cmpi eq, %arg1, %c4_i32 : i32
    %10 = arith.extui %9 : i1 to i32
    %c0_i32_8 = arith.constant 0 : i32
    %11 = arith.cmpi ne, %10, %c0_i32_8 : i32
    scf.if %11 {
      %c0_9 = arith.constant 0 : index
      %c0_10 = arith.constant 0 : index
      %12 = vector.load %arg8[%c0_9, %c0_10] : memref<16x128xf32, #tpu.memory_space<vmem>>, vector<16x128xf32>
      %c0_11 = arith.constant 0 : index
      %c0_12 = arith.constant 0 : index
      %13 = vector.load %arg4[%c0_11, %c0_12] : memref<1x128xf32, #tpu.memory_space<vmem>>, vector<1x128xf32>
      %14 = vector.broadcast %13 : vector<1x128xf32> to vector<16x128xf32>
      %15 = arith.addf %12, %14 : vector<16x128xf32>
      %16 = arith.truncf %15 : vector<16x128xf32> to vector<16x128xbf16>
      %c0_13 = arith.constant 0 : index
      %c0_14 = arith.constant 0 : index
      %17 = vector.load %arg5[%c0_13, %c0_14] : memref<128x128xbf16, #tpu.memory_space<vmem>>, vector<128x128xbf16>
      %cst_15 = arith.constant dense<0.000000e+00> : vector<16x128xf32>
      %18 = tpu.matmul %16, %17, %cst_15 {dimension_numbers = #tpu.dot_dimension_numbers<[1], [0], [0], [1], [0, 0, 1, 1], [], []>} : vector<16x128xbf16>, vector<128x128xbf16>, vector<16x128xf32> -> vector<16x128xf32>
      %c0_16 = arith.constant 0 : index
      %c0_17 = arith.constant 0 : index
      %19 = vector.load %arg6[%c0_16, %c0_17] : memref<1x128xf32, #tpu.memory_space<vmem>>, vector<1x128xf32>
      %20 = vector.broadcast %19 : vector<1x128xf32> to vector<16x128xf32>
      %21 = arith.addf %18, %20 : vector<16x128xf32>
      %c0_18 = arith.constant 0 : index
      %c0_19 = arith.constant 0 : index
      %22 = vector.load %arg7[%c0_18, %c0_19] : memref<16x128xf32, #tpu.memory_space<vmem>>, vector<16x128xf32>
      tpu.vector_store %arg7[%c0_18, %c0_19], %21 {strides = array<i32>} : memref<16x128xf32, #tpu.memory_space<vmem>>, vector<16x128xf32>,
    } else {
    }
    return
  }
  func.func @transform_0(%arg0: i32, %arg1: i32) -> (i32, i32) {
    %c0_i32 = arith.constant 0 : i32
    return %arg0, %arg1 : i32, i32
  }
  func.func @transform_1(%arg0: i32, %arg1: i32) -> (i32, i32) {
    %c0_i32 = arith.constant 0 : i32
    %c0_i32_0 = arith.constant 0 : i32
    return %arg1, %c0_i32 : i32, i32
  }
  func.func @transform_2(%arg0: i32, %arg1: i32) -> (i32, i32) {
    %c0_i32 = arith.constant 0 : i32
    %c0_i32_0 = arith.constant 0 : i32
    %c0_i32_1 = arith.constant 0 : i32
    return %c0_i32, %c0_i32_0 : i32, i32
  }
  func.func @transform_3(%arg0: i32, %arg1: i32) -> (i32, i32) {
    %c0_i32 = arith.constant 0 : i32
    %c0_i32_0 = arith.constant 0 : i32
    %c0_i32_1 = arith.constant 0 : i32
    return %c0_i32, %c0_i32_0 : i32, i32
  }
  func.func @transform_4(%arg0: i32, %arg1: i32) -> (i32, i32) {
    %c0_i32 = arith.constant 0 : i32
    %c0_i32_0 = arith.constant 0 : i32
    %c0_i32_1 = arith.constant 0 : i32
    return %c0_i32, %c0_i32_0 : i32, i32
  }
  func.func @transform_5(%arg0: i32, %arg1: i32) -> (i32, i32) {
    %c0_i32 = arith.constant 0 : i32
    %c0_i32_0 = arith.constant 0 : i32
    return %arg0, %c0_i32 : i32, i32
  }
}

</mosaic_0001>

<llo_original>
// kernel: generalized_segmentor_forward.3
$region0: #{generalized_segmentor_forward.3}
  #allocation0 [shape = 'u32[]', space=smem, size = 0x4, offset = 0x4, fixed_abs, tag = 'smem constant byte address 0x4 - core index']
  #allocation1 [shape = 'u32[144,128]{1,0:T(1,128)}', space=vmem, size = 0x12000, scoped, tag = 'internal scratch']
  #allocation2 [shape = 'f32[64,128]{1,0:T(8,128)}', space=vmem, size = 0x8000, scoped, tag = 'scratch operand']
  %s0 = inlined_call_operand.vmem [shape: bf16[128,128], index: 0, kind: input, shape index: {}]
  %s1 = inlined_call_operand.vmem [shape: bf16[128,128], index: 1, kind: input, shape index: {}]
  %s2 = inlined_call_operand.vmem [shape: f32[1,128], index: 2, kind: input, shape index: {}]
  %s3 = inlined_call_operand.vmem [shape: bf16[128,128], index: 3, kind: output, shape index: {}]
  %s4 = sld [smem:[#allocation0]]
  $region53: #{generalized_segmentor_forward.3} parent=0
    _
  %s6 = ssub.s32 1, %s4
  %s7 = scalar_select 0, %s6, %s4
  loop: start=0, step=1, limit=4
  $region2: #{generalized_segmentor_forward.3} parent=0 // loop_pre_header
    _
  $region3: #{generalized_segmentor_forward.3} parent=0 // loop_header
    %s9 = sphi 0, %s13
    %p10 = scmp.ge.s32.totalorder %s9, 4
    %s16 = sphi 0, %s35
    %s17 = sphi 0, %s31
    %s18 = sphi 0, %s27
    %s19 = sphi 0, %s16
    %s20 = sphi 0, %s17
    %s21 = sphi 0, %s18
    %s22 = sphi 0, %s19
    %s23 = sphi 0, %s20
    %s24 = sphi 0, %s21
    %s40 = sphi 0, %s42
    %s43 = sphi 0, %s40
    %s44 = sphi 0, %s43
    %s60 = sphi 0, %s44
    %s68 = sphi 0, %s70
    %s71 = sphi 0, %s68
    %s72 = sphi 0, %s71
    %s88 = sphi 0, %s72
    %s94 = sphi 0, %s96
    %s97 = sphi 0, %s94
    %s98 = sphi 0, %s97
    %s114 = sphi 0, %s98
    %s122 = sphi 0, %s124
    %s125 = sphi 0, %s122
    %s126 = sphi 0, %s125
    %s142 = sphi 0, %s126
  $region4: #{generalized_segmentor_forward.3} parent=0 // loop_header_branch
    %12 = sbr.rel (%p10) target = $region8
  $region5: #{generalized_segmentor_forward.3} parent=0 // loop_body
    %s14 = ssub.s32 %s9, 1
    %s15 = ssub.s32 %s9, 2
    %s25 = sadd.s32 1, %s18
    %p26 = scmp.ge.s32.totalorder %s25, 1
    %s27 = scalar_select %p26, 0, %s25
    %s28 = sadd.s32 1, %s17
    %s29 = scalar_select %p26, %s28, %s17
    %p30 = scmp.ge.s32.totalorder %s29, 1
    %s31 = scalar_select %p30, 0, %s29
    %s32 = sadd.s32 1, %s16
    %s33 = scalar_select %p30, %s32, %s16
    %p34 = scmp.ge.s32.totalorder %s33, 2
    %s35 = scalar_select %p34, 0, %s33
    %s36 = ssub.s32 %s16, %s35
    %s37 = ssub.s32 %s18, %s27
    %s38 = sor.u32 %s36, %s37
    %p39 = scmp.eq.s32.totalorder %s38, 0
    %s41 = sadd.s32 %s40, 1
    %s42 = scalar_select %p39, %s40, %s41
    %p45 = pneg %p39
    %p46 = scmp.eq.s32.totalorder %s9, 1
    %p47 = por %p45, %p46
    %p48 = scmp.ne.s32.totalorder %s40, %s43
    %p49 = scmp.eq.s32.totalorder %s9, 0
    %p50 = por %p48, %p49
    %p51 = scmp.ne.s32.totalorder %s40, %s43
    %p52 = scmp.eq.s32.totalorder %s14, 1
    %p53 = por %p51, %p52
    %p54 = scmp.ne.s32.totalorder %s43, %s44
    %p55 = scmp.eq.s32.totalorder %s14, 0
    %p56 = por %p54, %p55
    %p57 = scmp.ne.s32.totalorder %s43, %s44
    %p58 = scmp.eq.s32.totalorder %s15, 1
    %p59 = por %p57, %p58
    %p61 = scmp.ne.s32.totalorder %s44, %s60
    %p62 = scmp.eq.s32.totalorder %s15, 0
    %p63 = por %p61, %p62
    %s64 = ssub.s32 %s18, %s27
    %s65 = ssub.s32 %s17, %s31
    %s66 = sor.u32 %s64, %s65
    %p67 = scmp.eq.s32.totalorder %s66, 0
    %s69 = sadd.s32 %s68, 1
    %s70 = scalar_select %p67, %s68, %s69
    %p73 = pneg %p67
    %p74 = scmp.eq.s32.totalorder %s9, 1
    %p75 = por %p73, %p74
    %p76 = scmp.ne.s32.totalorder %s68, %s71
    %p77 = scmp.eq.s32.totalorder %s9, 0
    %p78 = por %p76, %p77
    %p79 = scmp.ne.s32.totalorder %s68, %s71
    %p80 = scmp.eq.s32.totalorder %s14, 1
    %p81 = por %p79, %p80
    %p82 = scmp.ne.s32.totalorder %s71, %s72
    %p83 = scmp.eq.s32.totalorder %s14, 0
    %p84 = por %p82, %p83
    %p85 = scmp.ne.s32.totalorder %s71, %s72
    %p86 = scmp.eq.s32.totalorder %s15, 1
    %p87 = por %p85, %p86
    %p89 = scmp.ne.s32.totalorder %s72, %s88
    %p90 = scmp.eq.s32.totalorder %s15, 0
    %p91 = por %p89, %p90
    %s92 = ssub.s32 %s17, %s31
    %p93 = scmp.eq.s32.totalorder %s92, 0
    %s95 = sadd.s32 %s94, 1
    %s96 = scalar_select %p93, %s94, %s95
    %p99 = pneg %p93
    %p100 = scmp.eq.s32.totalorder %s9, 1
    %p101 = por %p99, %p100
    %p102 = scmp.ne.s32.totalorder %s94, %s97
    %p103 = scmp.eq.s32.totalorder %s9, 0
    %p104 = por %p102, %p103
    %p105 = scmp.ne.s32.totalorder %s94, %s97
    %p106 = scmp.eq.s32.totalorder %s14, 1
    %p107 = por %p105, %p106
    %p108 = scmp.ne.s32.totalorder %s97, %s98
    %p109 = scmp.eq.s32.totalorder %s14, 0
    %p110 = por %p108, %p109
    %p111 = scmp.ne.s32.totalorder %s97, %s98
    %p112 = scmp.eq.s32.totalorder %s15, 1
    %p113 = por %p111, %p112
    %p115 = scmp.ne.s32.totalorder %s98, %s114
    %p116 = scmp.eq.s32.totalorder %s15, 0
    %p117 = por %p115, %p116
    %s118 = ssub.s32 %s16, %s35
    %s119 = ssub.s32 %s17, %s31
    %s120 = sor.u32 %s118, %s119
    %p121 = scmp.eq.s32.totalorder %s120, 0
    %s123 = sadd.s32 %s122, 1
    %s124 = scalar_select %p121, %s122, %s123
    %p127 = pneg %p121
    %p128 = scmp.eq.s32.totalorder %s9, 1
    %p129 = por %p127, %p128
    %p130 = scmp.ne.s32.totalorder %s122, %s125
    %p131 = scmp.eq.s32.totalorder %s9, 0
    %p132 = por %p130, %p131
    %p133 = scmp.ne.s32.totalorder %s122, %s125
    %p134 = scmp.eq.s32.totalorder %s14, 1
    %p135 = por %p133, %p134
    %p136 = scmp.ne.s32.totalorder %s125, %s126
    %p137 = scmp.eq.s32.totalorder %s14, 0
    %p138 = por %p136, %p137
    %p139 = scmp.ne.s32.totalorder %s125, %s126
    %p140 = scmp.eq.s32.totalorder %s15, 1
    %p141 = por %p139, %p140
    %p143 = scmp.ne.s32.totalorder %s126, %s142
    %p144 = scmp.eq.s32.totalorder %s15, 0
    %p145 = por %p143, %p144
    %p146 = scmp.le.s32.totalorder 1, %s9
    %p147 = scmp.lt.s32.totalorder %s9, 3
    %p148 = pnand %p146, %p147
    %p149 = pneg %p148
    // Predicated region
    $region9: #{generalized_segmentor_forward.3} parent=5 // pred_check
      _
    $region10: #{generalized_segmentor_forward.3} parent=5 // pred_check_branch
      %151 = sbr.rel (%p148) target = $region12
    $region11: #{generalized_segmentor_forward.3} parent=5 // pred_region
      %s152 = ssub.s32 %s9, 1
      // Predicated region
      $region13: #{generalized_segmentor_forward.3} parent=11 // pred_check
        %p153 = pneg %p84
      $region14: #{generalized_segmentor_forward.3} parent=11 // pred_check_branch
        %155 = sbr.rel (%p153) target = $region16
      $region15: #{generalized_segmentor_forward.3} parent=11 // pred_region
        %s156 = smul.u32 16, %s21
        %p157 = scmp.lt.s32.totalorder %s156, 15
        %s158 = scalar_select %p157, %s156, 15
        %p159 = scmp.lt.s32.totalorder %s20, 0
        %s160 = scalar_select %p159, %s20, 0
        %s161 = sadd.s32 %s160, %s158
        %s162 = smul.addr %s161, 4
        %s163 = scalar_lea.vmem %s1, %s162
        %s164 = smul.u32 16, %s21
      $region16: #{generalized_segmentor_forward.3} parent=11 // pred_fallthru
        _
      // Predicated region
      $region17: #{generalized_segmentor_forward.3} parent=11 // pred_check
        %p165 = pneg %p110
      $region18: #{generalized_segmentor_forward.3} parent=11 // pred_check_branch
        %167 = sbr.rel (%p165) target = $region20
      $region19: #{generalized_segmentor_forward.3} parent=11 // pred_region
        %p168 = scmp.lt.s32.totalorder %s20, 0
        %s169 = scalar_select %p168, %s20, 0
        %s170 = scalar_lea.vmem %s2, %s169
      $region20: #{generalized_segmentor_forward.3} parent=11 // pred_fallthru
        _
    $region12: #{generalized_segmentor_forward.3} parent=5 // pred_fallthru
      _
    %p171 = scmp.lt.s32.totalorder %s9, 2
    // Predicated region
    $region21: #{generalized_segmentor_forward.3} parent=5 // pred_check
      %p172 = pneg %p171
    $region22: #{generalized_segmentor_forward.3} parent=5 // pred_check_branch
      %174 = sbr.rel (%p172) target = $region24
    $region23: #{generalized_segmentor_forward.3} parent=5 // pred_region
      // Predicated region
      $region25: #{generalized_segmentor_forward.3} parent=23 // pred_check
        %p175 = pneg %p50
      $region26: #{generalized_segmentor_forward.3} parent=23 // pred_check_branch
        %177 = sbr.rel (%p175) target = $region28
      $region27: #{generalized_segmentor_forward.3} parent=23 // pred_region
        %s178 = smul.u32 8, %s16
        %p179 = scmp.lt.s32.totalorder %s178, 15
        %s180 = scalar_select %p179, %s178, 15
        %p181 = scmp.lt.s32.totalorder %s18, 0
        %s182 = scalar_select %p181, %s18, 0
        %s183 = sadd.s32 %s182, %s180
        %s184 = smul.addr %s183, 4
        %s185 = scalar_lea.vmem %s0, %s184
        %s186 = smul.u32 8, %s16
      $region28: #{generalized_segmentor_forward.3} parent=23 // pred_fallthru
        _
    $region24: #{generalized_segmentor_forward.3} parent=5 // pred_fallthru
      _
    %p187 = scmp.le.s32.totalorder 1, %s9
    %p188 = scmp.lt.s32.totalorder %s9, 3
    %p189 = pnand %p187, %p188
    %p190 = pneg %p189
    // Predicated region
    $region29: #{generalized_segmentor_forward.3} parent=5 // pred_check
      _
    $region30: #{generalized_segmentor_forward.3} parent=5 // pred_check_branch
      %192 = sbr.rel (%p189) target = $region32
    $region31: #{generalized_segmentor_forward.3} parent=5 // pred_region
      %s193 = ssub.s32 %s9, 1
      %s194 = smul.u32 8, %s19
      %p195 = scmp.lt.s32.totalorder %s194, 15
      %s196 = scalar_select %p195, %s194, 15
      %p197 = scmp.lt.s32.totalorder %s21, 0
      %s198 = scalar_select %p197, %s21, 0
      %s199 = sadd.s32 %s198, %s196
      %s200 = smul.addr %s199, 4
      %s201 = scalar_lea.vmem %s0, %s200
      %p202 = pneg %p56
      %p203 = pneg %p53
      %s204 = smul.u32 16, %s21
      %p205 = scmp.lt.s32.totalorder %s204, 15
      %s206 = scalar_select %p205, %s204, 15
      %p207 = scmp.lt.s32.totalorder %s20, 0
      %s208 = scalar_select %p207, %s20, 0
      %s209 = sadd.s32 %s208, %s206
      %s210 = smul.addr %s209, 4
      %s211 = scalar_lea.vmem %s1, %s210
      %p212 = pneg %p84
      %p213 = pneg %p81
      %p214 = scmp.lt.s32.totalorder %s20, 0
      %s215 = scalar_select %p214, %s20, 0
      %s216 = scalar_lea.vmem %s2, %s215
      %p217 = pneg %p110
      %p218 = pneg %p107
      %p219 = pneg %p138
      %p220 = pneg %p135
      %s221 = smul.u32 8, %s19
      %p222 = scmp.lt.s32.totalorder %s221, 15
      %s223 = scalar_select %p222, %s221, 15
      %p224 = scmp.lt.s32.totalorder %s20, 0
      %s225 = scalar_select %p224, %s20, 0
      %s226 = sadd.s32 %s225, %s223
      %s227 = smul.addr %s226, 4
      %s228 = scalar_lea.vmem %s3, %s227
      %s229 = smul.u32 8, %s19
      %p230 = scmp.lt.s32.totalorder %s229, 15
      %s231 = scalar_select %p230, %s229, 15
      %p232 = scmp.lt.s32.totalorder %s21, 0
      %s233 = scalar_select %p232, %s21, 0
      %s234 = sadd.s32 %s233, %s231
      %s235 = smul.addr %s234, 4
      %s236 = scalar_lea.vmem %s0, %s235
      %s237 = smul.u32 8, %s19
      %s238 = smul.u32 16, %s21
      %p239 = scmp.lt.s32.totalorder %s238, 15
      %s240 = scalar_select %p239, %s238, 15
      %p241 = scmp.lt.s32.totalorder %s20, 0
      %s242 = scalar_select %p241, %s20, 0
      %s243 = sadd.s32 %s242, %s240
      %s244 = smul.addr %s243, 4
      %s245 = scalar_lea.vmem %s1, %s244
      %s246 = smul.u32 16, %s21
      %p247 = scmp.lt.s32.totalorder %s20, 0
      %s248 = scalar_select %p247, %s20, 0
      %s249 = scalar_lea.vmem %s2, %s248
      %s250 = smul.u32 8, %s19
      %p251 = scmp.lt.s32.totalorder %s250, 15
      %s252 = scalar_select %p251, %s250, 15
      %p253 = scmp.lt.s32.totalorder %s20, 0
      %s254 = scalar_select %p253, %s20, 0
      %s255 = sadd.s32 %s254, %s252
      %s256 = smul.addr %s255, 4
      %s257 = scalar_lea.vmem %s3, %s256
      %s258 = smul.u32 8, %s19
      %p260 = scmp.eq.s32.totalorder %s21, 0
      // Predicated region
      $region33: #{generalized_segmentor_forward.3} parent=31 // pred_check
        %p261 = pneg %p260
      $region34: #{generalized_segmentor_forward.3} parent=31 // pred_check_branch
        %263 = sbr.rel (%p261) target = $region36
      $region35: #{generalized_segmentor_forward.3} parent=31 // pred_region
        %264 = vst [vmem:[#allocation2] sm:$0xff] 0.0
        %265 = vst [vmem:[#allocation2 + $0x8] sm:$0xff] 0.0
        %266 = vst [vmem:[#allocation2 + $0x10] sm:$0xff] 0.0
        %267 = vst [vmem:[#allocation2 + $0x18] sm:$0xff] 0.0
        %268 = vst [vmem:[#allocation2 + $0x20] sm:$0xff] 0.0
        %269 = vst [vmem:[#allocation2 + $0x28] sm:$0xff] 0.0
        %270 = vst [vmem:[#allocation2 + $0x30] sm:$0xff] 0.0
        %271 = vst [vmem:[#allocation2 + $0x38] sm:$0xff] 0.0
      $region36: #{generalized_segmentor_forward.3} parent=31 // pred_fallthru
        _
      %v272 = vld [vmem:[#allocation2] sm:$0xff]
      %v273 = vld [vmem:[#allocation2 + $0x8] sm:$0xff]
      %v274 = vld [vmem:[#allocation2 + $0x10] sm:$0xff]
      %v275 = vld [vmem:[#allocation2 + $0x18] sm:$0xff]
      %v276 = vld [vmem:[#allocation2 + $0x20] sm:$0xff]
      %v277 = vld [vmem:[#allocation2 + $0x28] sm:$0xff]
      %v278 = vld [vmem:[#allocation2 + $0x30] sm:$0xff]
      %v279 = vld [vmem:[#allocation2 + $0x38] sm:$0xff]
      %v280 = vld [vmem:[%s236] sm:$0xf]
      %v281 = vld [vmem:[%s236 + $0x4] sm:$0xf]
      %v282 = vld [vmem:[%s236 + $0x8] sm:$0xf]
      %v283 = vld [vmem:[%s236 + $0xc] sm:$0xf]
      %v284 = vld [vmem:[%s236 + $0x10] sm:$0xf]
      %v285 = vld [vmem:[%s236 + $0x14] sm:$0xf]
      %v286 = vld [vmem:[%s236 + $0x18] sm:$0xf]
      %v287 = vld [vmem:[%s236 + $0x1c] sm:$0xf]
      %v288 = vld [vmem:[%s245] sm:$0xf]
      %v289 = vld [vmem:[%s245 + $0x4] sm:$0xf]
      %v290 = vld [vmem:[%s245 + $0x8] sm:$0xf]
      %v291 = vld [vmem:[%s245 + $0xc] sm:$0xf]
      %v292 = vld [vmem:[%s245 + $0x10] sm:$0xf]
      %v293 = vld [vmem:[%s245 + $0x14] sm:$0xf]
      %v294 = vld [vmem:[%s245 + $0x18] sm:$0xf]
      %v295 = vld [vmem:[%s245 + $0x1c] sm:$0xf]
      %v296 = vld [vmem:[%s245 + $0x20] sm:$0xf]
      %v297 = vld [vmem:[%s245 + $0x24] sm:$0xf]
      %v298 = vld [vmem:[%s245 + $0x28] sm:$0xf]
      %v299 = vld [vmem:[%s245 + $0x2c] sm:$0xf]
      %v300 = vld [vmem:[%s245 + $0x30] sm:$0xf]
      %v301 = vld [vmem:[%s245 + $0x34] sm:$0xf]
      %v302 = vld [vmem:[%s245 + $0x38] sm:$0xf]
      %v303 = vld [vmem:[%s245 + $0x3c] sm:$0xf]
      %v312 = vunpack.c.l.b16 %v280
      %v313 = vunpack.c.l.b16 %v281
      %v314 = vunpack.c.l.b16 %v282
      %v315 = vunpack.c.l.b16 %v283
      %v316 = vunpack.c.l.b16 %v284
      %v317 = vunpack.c.l.b16 %v285
      %v318 = vunpack.c.l.b16 %v286
      %v319 = vunpack.c.l.b16 %v287
      %v320 = vpack.c.b16 %v313, %v312
      %v321 = vpack.c.b16 %v315, %v314
      %v322 = vpack.c.b16 %v317, %v316
      %v323 = vpack.c.b16 %v319, %v318
      %v344 = vunpack.c.l.b16 %v288
      %v345 = vunpack.c.l.b16 %v289
      %v346 = vunpack.c.l.b16 %v290
      %v347 = vunpack.c.l.b16 %v291
      %v348 = vunpack.c.l.b16 %v292
      %v349 = vunpack.c.l.b16 %v293
      %v350 = vunpack.c.l.b16 %v294
      %v351 = vunpack.c.l.b16 %v295
      %v352 = vunpack.c.l.b16 %v296
      %v353 = vunpack.c.l.b16 %v297
      %v354 = vunpack.c.l.b16 %v298
      %v355 = vunpack.c.l.b16 %v299
      %v356 = vunpack.c.l.b16 %v300
      %v357 = vunpack.c.l.b16 %v301
      %v358 = vunpack.c.l.b16 %v302
      %v359 = vunpack.c.l.b16 %v303
      %v360 = vpack.c.b16 %v345, %v344
      %v361 = vpack.c.b16 %v347, %v346
      %v362 = vpack.c.b16 %v349, %v348
      %v363 = vpack.c.b16 %v351, %v350
      %v364 = vpack.c.b16 %v353, %v352
      %v365 = vpack.c.b16 %v355, %v354
      %v366 = vpack.c.b16 %v357, %v356
      %v367 = vpack.c.b16 %v359, %v358
      %376 = vmatprep.subr.bf16.mxu0 0
      %377 = vmatpush1.bf16.msra.mxu0 %v360
      %378 = vmatprep.subr.bf16.mxu0 0
      %379 = vmatpush1.bf16.msra.mxu0 %v361
      %380 = vmatprep.subr.bf16.mxu0 0
      %381 = vmatpush1.bf16.msra.mxu0 %v362
      %382 = vmatprep.subr.bf16.mxu0 0
      %383 = vmatpush1.bf16.msra.mxu0 %v363
      %384 = vmatprep.subr.bf16.mxu0 0
      %385 = vmatpush1.bf16.msra.mxu0 %v364
      %386 = vmatprep.subr.bf16.mxu0 0
      %387 = vmatpush1.bf16.msra.mxu0 %v365
      %388 = vmatprep.subr.bf16.mxu0 0
      %389 = vmatpush1.bf16.msra.mxu0 %v366
      %390 = vmatprep.subr.bf16.mxu0 0
      %391 = vmatpush1.bf16.msra.mxu0 %v367
      %392 = vmatprep.subr.bf16.mxu0 0
      %393 = vmatpush1.bf16.msra.mxu0 0
      %394 = vmatprep.subr.bf16.mxu0 0
      %395 = vmatpush1.bf16.msra.mxu0 0
      %396 = vmatprep.subr.bf16.mxu0 0
      %397 = vmatpush1.bf16.msra.mxu0 0
      %398 = vmatprep.subr.bf16.mxu0 0
      %399 = vmatpush1.bf16.msra.mxu0 0
      %400 = vmatprep.subr.bf16.mxu0 0
      %401 = vmatpush1.bf16.msra.mxu0 0
      %402 = vmatprep.subr.bf16.mxu0 0
      %403 = vmatpush1.bf16.msra.mxu0 0
      %404 = vmatprep.subr.bf16.mxu0 0
      %405 = vmatpush1.bf16.msra.mxu0 0
      %406 = vmatprep.subr.bf16.mxu0 0
      %407 = vmatpush1.bf16.msra.mxu0 0
      %408 = vmatprep.mubr.bf16.mxu0 0
      %409 = vmatmul.mubr.bf16.gmra.mrb[0].mxu0 %v320
      %v410 = vpop.f32.mrb[0].mxu0
      %v411 = vadd.f32 0.0, %v410
      %v412 = vpop.f32.mrb[0].mxu0
      %v413 = vpop.f32.mrb[0].mxu0
      %v414 = vadd.f32 0.0, %v413
      %v415 = vpop.f32.mrb[0].mxu0
      %416 = vmatprep.mubr.bf16.mxu0 0
      %417 = vmatmul.mubr.bf16.gmra.mrb[0].mxu0 %v321
      %v418 = vpop.f32.mrb[0].mxu0
      %v419 = vadd.f32 0.0, %v418
      %v420 = vpop.f32.mrb[0].mxu0
      %v421 = vpop.f32.mrb[0].mxu0
      %v422 = vadd.f32 0.0, %v421
      %v423 = vpop.f32.mrb[0].mxu0
      %424 = vmatprep.mubr.bf16.mxu0 0
      %425 = vmatmul.mubr.bf16.gmra.mrb[0].mxu0 %v322
      %v426 = vpop.f32.mrb[0].mxu0
      %v427 = vadd.f32 0.0, %v426
      %v428 = vpop.f32.mrb[0].mxu0
      %v429 = vpop.f32.mrb[0].mxu0
      %v430 = vadd.f32 0.0, %v429
      %v431 = vpop.f32.mrb[0].mxu0
      %432 = vmatprep.mubr.bf16.mxu0 0
      %433 = vmatmul.mubr.bf16.gmra.mrb[0].mxu0 %v323
      %v434 = vpop.f32.mrb[0].mxu0
      %v435 = vadd.f32 0.0, %v434
      %v436 = vpop.f32.mrb[0].mxu0
      %v437 = vpop.f32.mrb[0].mxu0
      %v438 = vadd.f32 0.0, %v437
      %v439 = vpop.f32.mrb[0].mxu0
      %440 = vdwg.mxu0
      %v441 = vadd.f32 %v272, %v411
      %v442 = vadd.f32 %v273, %v414
      %v443 = vadd.f32 %v274, %v419
      %v444 = vadd.f32 %v275, %v422
      %v445 = vadd.f32 %v276, %v427
      %v446 = vadd.f32 %v277, %v430
      %v447 = vadd.f32 %v278, %v435
      %v448 = vadd.f32 %v279, %v438
      %449 = vst [vmem:[#allocation2] sm:$0xff] %v441
      %450 = vst [vmem:[#allocation2 + $0x8] sm:$0xff] %v442
      %451 = vst [vmem:[#allocation2 + $0x10] sm:$0xff] %v443
      %452 = vst [vmem:[#allocation2 + $0x18] sm:$0xff] %v444
      %453 = vst [vmem:[#allocation2 + $0x20] sm:$0xff] %v445
      %454 = vst [vmem:[#allocation2 + $0x28] sm:$0xff] %v446
      %455 = vst [vmem:[#allocation2 + $0x30] sm:$0xff] %v447
      %456 = vst [vmem:[#allocation2 + $0x38] sm:$0xff] %v448
      // Predicated region
      $region37: #{generalized_segmentor_forward.3} parent=31 // pred_check
        %p457 = pneg %p260
      $region38: #{generalized_segmentor_forward.3} parent=31 // pred_check_branch
        %459 = sbr.rel (%p457) target = $region40
      $region39: #{generalized_segmentor_forward.3} parent=31 // pred_region
        %v460 = vld [vmem:[#allocation2] sm:$0xff]
        %v461 = vld [vmem:[#allocation2 + $0x8] sm:$0xff]
        %v462 = vld [vmem:[#allocation2 + $0x10] sm:$0xff]
        %v463 = vld [vmem:[#allocation2 + $0x18] sm:$0xff]
        %v464 = vld [vmem:[#allocation2 + $0x20] sm:$0xff]
        %v465 = vld [vmem:[#allocation2 + $0x28] sm:$0xff]
        %v466 = vld [vmem:[#allocation2 + $0x30] sm:$0xff]
        %v467 = vld [vmem:[#allocation2 + $0x38] sm:$0xff]
        %v468 = vld [vmem:[%s249] sm:$0x1]
        %v470 = vlaneseq
        %v471 = vshrl.u32 %v470, 7
        %v472 = vsub.s32 0, %v471
        %v473 = vrot.slane %v468, %v472
        %v475 = vadd.f32 %v460, %v473
        %v476 = vadd.f32 %v461, %v473
        %v477 = vadd.f32 %v462, %v473
        %v478 = vadd.f32 %v463, %v473
        %v479 = vadd.f32 %v464, %v473
        %v480 = vadd.f32 %v465, %v473
        %v481 = vadd.f32 %v466, %v473
        %v482 = vadd.f32 %v467, %v473
        %v483 = vmax.f32 %v475, 0.0
        %v484 = vmax.f32 %v476, 0.0
        %v485 = vmax.f32 %v477, 0.0
        %v486 = vmax.f32 %v478, 0.0
        %v487 = vmax.f32 %v479, 0.0
        %v488 = vmax.f32 %v480, 0.0
        %v489 = vmax.f32 %v481, 0.0
        %v490 = vmax.f32 %v482, 0.0
        %v491 = vpack.c.bf16 %v484, %v483
        %v492 = vpack.c.bf16 %v486, %v485
        %v493 = vpack.c.bf16 %v488, %v487
        %v494 = vpack.c.bf16 %v490, %v489
        %v499 = vunpack.c.l.b16 %v491
        %v500 = vunpack.c.h.b16 %v491
        %v501 = vunpack.c.l.b16 %v492
        %v502 = vunpack.c.h.b16 %v492
        %v503 = vunpack.c.l.b16 %v493
        %v504 = vunpack.c.h.b16 %v493
        %v505 = vunpack.c.l.b16 %v494
        %v506 = vunpack.c.h.b16 %v494
        %v507 = vpack.c.b16 %v499, %v499
        %v508 = vpack.c.b16 %v500, %v500
        %v509 = vpack.c.b16 %v501, %v501
        %v510 = vpack.c.b16 %v502, %v502
        %v511 = vpack.c.b16 %v503, %v503
        %v512 = vpack.c.b16 %v504, %v504
        %v513 = vpack.c.b16 %v505, %v505
        %v514 = vpack.c.b16 %v506, %v506
        %523 = vst [vmem:[%s257] sm:$0xf] %v507
        %524 = vst [vmem:[%s257 + $0x4] sm:$0xf] %v508
        %525 = vst [vmem:[%s257 + $0x8] sm:$0xf] %v509
        %526 = vst [vmem:[%s257 + $0xc] sm:$0xf] %v510
        %527 = vst [vmem:[%s257 + $0x10] sm:$0xf] %v511
        %528 = vst [vmem:[%s257 + $0x14] sm:$0xf] %v512
        %529 = vst [vmem:[%s257 + $0x18] sm:$0xf] %v513
        %530 = vst [vmem:[%s257 + $0x1c] sm:$0xf] %v514
      $region40: #{generalized_segmentor_forward.3} parent=31 // pred_fallthru
        _
      %s531 = smul.u32 8, %s19
      %p532 = scmp.lt.s32.totalorder %s531, 15
      %s533 = scalar_select %p532, %s531, 15
      %p534 = scmp.lt.s32.totalorder %s20, 0
      %s535 = scalar_select %p534, %s20, 0
      %s536 = sadd.s32 %s535, %s533
      %s537 = smul.addr %s536, 4
      %s538 = scalar_lea.vmem %s3, %s537
      // Predicated region
      $region41: #{generalized_segmentor_forward.3} parent=31 // pred_check
        %p539 = pneg %p135
      $region42: #{generalized_segmentor_forward.3} parent=31 // pred_check_branch
        %541 = sbr.rel (%p539) target = $region44
      $region43: #{generalized_segmentor_forward.3} parent=31 // pred_region
        %s542 = smul.u32 8, %s19
      $region44: #{generalized_segmentor_forward.3} parent=31 // pred_fallthru
        _
    $region32: #{generalized_segmentor_forward.3} parent=5 // pred_fallthru
      _
    %p543 = scmp.le.s32.totalorder 2, %s9
    // Predicated region
    $region45: #{generalized_segmentor_forward.3} parent=5 // pred_check
      %p544 = pneg %p543
    $region46: #{generalized_segmentor_forward.3} parent=5 // pred_check_branch
      %546 = sbr.rel (%p544) target = $region48
    $region47: #{generalized_segmentor_forward.3} parent=5 // pred_region
      %s547 = ssub.s32 %s9, 2
      // Predicated region
      $region49: #{generalized_segmentor_forward.3} parent=47 // pred_check
        %p548 = pneg %p141
      $region50: #{generalized_segmentor_forward.3} parent=47 // pred_check_branch
        %550 = sbr.rel (%p548) target = $region52
      $region51: #{generalized_segmentor_forward.3} parent=47 // pred_region
        %s551 = smul.u32 8, %s22
        %p552 = scmp.lt.s32.totalorder %s551, 15
        %s553 = scalar_select %p552, %s551, 15
        %p554 = scmp.lt.s32.totalorder %s23, 0
        %s555 = scalar_select %p554, %s23, 0
        %s556 = sadd.s32 %s555, %s553
        %s557 = smul.addr %s556, 4
        %s558 = scalar_lea.vmem %s3, %s557
      $region52: #{generalized_segmentor_forward.3} parent=47 // pred_fallthru
        _
    $region48: #{generalized_segmentor_forward.3} parent=5 // pred_fallthru
      _
  $region6: #{generalized_segmentor_forward.3} parent=0 // loop_footer
    %s13 = sadd.s32 1, %s9
  $region7: #{generalized_segmentor_forward.3} parent=0 // loop_footer_branch
    %8 = sbr.rel target = $region3
  $region8: #{generalized_segmentor_forward.3} parent=0 // loop_exit
    _

// kernel: generalized_segmentor_forward.4
$region0: #{generalized_segmentor_forward.4}
  #allocation0 [shape = 'u32[]', space=smem, size = 0x4, offset = 0x4, fixed_abs, tag = 'smem constant byte address 0x4 - core index']
  #allocation1 [shape = 'u32[144,128]{1,0:T(1,128)}', space=vmem, size = 0x12000, scoped, tag = 'internal scratch']
  #allocation2 [shape = 'f32[16,128]{1,0:T(8,128)}', space=vmem, size = 0x2000, scoped, tag = 'scratch operand']
  %s0 = inlined_call_operand.vmem [shape: bf16[32,256], index: 0, kind: input, shape index: {}]
  %s1 = inlined_call_operand.vmem [shape: bf16[256,128], index: 1, kind: input, shape index: {}]
  %s2 = inlined_call_operand.vmem [shape: f32[1,128], index: 2, kind: input, shape index: {}]
  %s3 = inlined_call_operand.vmem [shape: bf16[32,128], index: 3, kind: output, shape index: {}]
  %s4 = sld [smem:[#allocation0]]
  $region53: #{generalized_segmentor_forward.4} parent=0
    _
  %s6 = ssub.s32 1, %s4
  %s7 = scalar_select 0, %s6, %s4
  loop: start=0, step=1, limit=4
  $region2: #{generalized_segmentor_forward.4} parent=0 // loop_pre_header
    _
  $region3: #{generalized_segmentor_forward.4} parent=0 // loop_header
    %s9 = sphi 0, %s13
    %p10 = scmp.ge.s32.totalorder %s9, 4
    %s16 = sphi 0, %s35
    %s17 = sphi 0, %s31
    %s18 = sphi 0, %s27
    %s19 = sphi 0, %s16
    %s20 = sphi 0, %s17
    %s21 = sphi 0, %s18
    %s22 = sphi 0, %s19
    %s23 = sphi 0, %s20
    %s24 = sphi 0, %s21
    %s40 = sphi 0, %s42
    %s43 = sphi 0, %s40
    %s44 = sphi 0, %s43
    %s60 = sphi 0, %s44
    %s68 = sphi 0, %s70
    %s71 = sphi 0, %s68
    %s72 = sphi 0, %s71
    %s88 = sphi 0, %s72
    %s94 = sphi 0, %s96
    %s97 = sphi 0, %s94
    %s98 = sphi 0, %s97
    %s114 = sphi 0, %s98
    %s122 = sphi 0, %s124
    %s125 = sphi 0, %s122
    %s126 = sphi 0, %s125
    %s142 = sphi 0, %s126
  $region4: #{generalized_segmentor_forward.4} parent=0 // loop_header_branch
    %12 = sbr.rel (%p10) target = $region8
  $region5: #{generalized_segmentor_forward.4} parent=0 // loop_body
    %s14 = ssub.s32 %s9, 1
    %s15 = ssub.s32 %s9, 2
    %s25 = sadd.s32 1, %s18
    %p26 = scmp.ge.s32.totalorder %s25, 1
    %s27 = scalar_select %p26, 0, %s25
    %s28 = sadd.s32 1, %s17
    %s29 = scalar_select %p26, %s28, %s17
    %p30 = scmp.ge.s32.totalorder %s29, 1
    %s31 = scalar_select %p30, 0, %s29
    %s32 = sadd.s32 1, %s16
    %s33 = scalar_select %p30, %s32, %s16
    %p34 = scmp.ge.s32.totalorder %s33, 2
    %s35 = scalar_select %p34, 0, %s33
    %s36 = ssub.s32 %s16, %s35
    %s37 = ssub.s32 %s18, %s27
    %s38 = sor.u32 %s36, %s37
    %p39 = scmp.eq.s32.totalorder %s38, 0
    %s41 = sadd.s32 %s40, 1
    %s42 = scalar_select %p39, %s40, %s41
    %p45 = pneg %p39
    %p46 = scmp.eq.s32.totalorder %s9, 1
    %p47 = por %p45, %p46
    %p48 = scmp.ne.s32.totalorder %s40, %s43
    %p49 = scmp.eq.s32.totalorder %s9, 0
    %p50 = por %p48, %p49
    %p51 = scmp.ne.s32.totalorder %s40, %s43
    %p52 = scmp.eq.s32.totalorder %s14, 1
    %p53 = por %p51, %p52
    %p54 = scmp.ne.s32.totalorder %s43, %s44
    %p55 = scmp.eq.s32.totalorder %s14, 0
    %p56 = por %p54, %p55
    %p57 = scmp.ne.s32.totalorder %s43, %s44
    %p58 = scmp.eq.s32.totalorder %s15, 1
    %p59 = por %p57, %p58
    %p61 = scmp.ne.s32.totalorder %s44, %s60
    %p62 = scmp.eq.s32.totalorder %s15, 0
    %p63 = por %p61, %p62
    %s64 = ssub.s32 %s18, %s27
    %s65 = ssub.s32 %s17, %s31
    %s66 = sor.u32 %s64, %s65
    %p67 = scmp.eq.s32.totalorder %s66, 0
    %s69 = sadd.s32 %s68, 1
    %s70 = scalar_select %p67, %s68, %s69
    %p73 = pneg %p67
    %p74 = scmp.eq.s32.totalorder %s9, 1
    %p75 = por %p73, %p74
    %p76 = scmp.ne.s32.totalorder %s68, %s71
    %p77 = scmp.eq.s32.totalorder %s9, 0
    %p78 = por %p76, %p77
    %p79 = scmp.ne.s32.totalorder %s68, %s71
    %p80 = scmp.eq.s32.totalorder %s14, 1
    %p81 = por %p79, %p80
    %p82 = scmp.ne.s32.totalorder %s71, %s72
    %p83 = scmp.eq.s32.totalorder %s14, 0
    %p84 = por %p82, %p83
    %p85 = scmp.ne.s32.totalorder %s71, %s72
    %p86 = scmp.eq.s32.totalorder %s15, 1
    %p87 = por %p85, %p86
    %p89 = scmp.ne.s32.totalorder %s72, %s88
    %p90 = scmp.eq.s32.totalorder %s15, 0
    %p91 = por %p89, %p90
    %s92 = ssub.s32 %s17, %s31
    %p93 = scmp.eq.s32.totalorder %s92, 0
    %s95 = sadd.s32 %s94, 1
    %s96 = scalar_select %p93, %s94, %s95
    %p99 = pneg %p93
    %p100 = scmp.eq.s32.totalorder %s9, 1
    %p101 = por %p99, %p100
    %p102 = scmp.ne.s32.totalorder %s94, %s97
    %p103 = scmp.eq.s32.totalorder %s9, 0
    %p104 = por %p102, %p103
    %p105 = scmp.ne.s32.totalorder %s94, %s97
    %p106 = scmp.eq.s32.totalorder %s14, 1
    %p107 = por %p105, %p106
    %p108 = scmp.ne.s32.totalorder %s97, %s98
    %p109 = scmp.eq.s32.totalorder %s14, 0
    %p110 = por %p108, %p109
    %p111 = scmp.ne.s32.totalorder %s97, %s98
    %p112 = scmp.eq.s32.totalorder %s15, 1
    %p113 = por %p111, %p112
    %p115 = scmp.ne.s32.totalorder %s98, %s114
    %p116 = scmp.eq.s32.totalorder %s15, 0
    %p117 = por %p115, %p116
    %s118 = ssub.s32 %s16, %s35
    %s119 = ssub.s32 %s17, %s31
    %s120 = sor.u32 %s118, %s119
    %p121 = scmp.eq.s32.totalorder %s120, 0
    %s123 = sadd.s32 %s122, 1
    %s124 = scalar_select %p121, %s122, %s123
    %p127 = pneg %p121
    %p128 = scmp.eq.s32.totalorder %s9, 1
    %p129 = por %p127, %p128
    %p130 = scmp.ne.s32.totalorder %s122, %s125
    %p131 = scmp.eq.s32.totalorder %s9, 0
    %p132 = por %p130, %p131
    %p133 = scmp.ne.s32.totalorder %s122, %s125
    %p134 = scmp.eq.s32.totalorder %s14, 1
    %p135 = por %p133, %p134
    %p136 = scmp.ne.s32.totalorder %s125, %s126
    %p137 = scmp.eq.s32.totalorder %s14, 0
    %p138 = por %p136, %p137
    %p139 = scmp.ne.s32.totalorder %s125, %s126
    %p140 = scmp.eq.s32.totalorder %s15, 1
    %p141 = por %p139, %p140
    %p143 = scmp.ne.s32.totalorder %s126, %s142
    %p144 = scmp.eq.s32.totalorder %s15, 0
    %p145 = por %p143, %p144
    %p146 = scmp.le.s32.totalorder 1, %s9
    %p147 = scmp.lt.s32.totalorder %s9, 3
    %p148 = pnand %p146, %p147
    %p149 = pneg %p148
    // Predicated region
    $region9: #{generalized_segmentor_forward.4} parent=5 // pred_check
      _
    $region10: #{generalized_segmentor_forward.4} parent=5 // pred_check_branch
      %151 = sbr.rel (%p148) target = $region12
    $region11: #{generalized_segmentor_forward.4} parent=5 // pred_region
      %s152 = ssub.s32 %s9, 1
      // Predicated region
      $region13: #{generalized_segmentor_forward.4} parent=11 // pred_check
        %p153 = pneg %p84
      $region14: #{generalized_segmentor_forward.4} parent=11 // pred_check_branch
        %155 = sbr.rel (%p153) target = $region16
      $region15: #{generalized_segmentor_forward.4} parent=11 // pred_region
        %s156 = smul.u32 32, %s21
        %p157 = scmp.lt.s32.totalorder %s156, 31
        %s158 = scalar_select %p157, %s156, 31
        %p159 = scmp.lt.s32.totalorder %s20, 0
        %s160 = scalar_select %p159, %s20, 0
        %s161 = sadd.s32 %s160, %s158
        %s162 = smul.addr %s161, 4
        %s163 = scalar_lea.vmem %s1, %s162
        %s164 = smul.u32 32, %s21
      $region16: #{generalized_segmentor_forward.4} parent=11 // pred_fallthru
        _
      // Predicated region
      $region17: #{generalized_segmentor_forward.4} parent=11 // pred_check
        %p165 = pneg %p110
      $region18: #{generalized_segmentor_forward.4} parent=11 // pred_check_branch
        %167 = sbr.rel (%p165) target = $region20
      $region19: #{generalized_segmentor_forward.4} parent=11 // pred_region
        %p168 = scmp.lt.s32.totalorder %s20, 0
        %s169 = scalar_select %p168, %s20, 0
        %s170 = scalar_lea.vmem %s2, %s169
      $region20: #{generalized_segmentor_forward.4} parent=11 // pred_fallthru
        _
    $region12: #{generalized_segmentor_forward.4} parent=5 // pred_fallthru
      _
    %p171 = scmp.lt.s32.totalorder %s9, 2
    // Predicated region
    $region21: #{generalized_segmentor_forward.4} parent=5 // pred_check
      %p172 = pneg %p171
    $region22: #{generalized_segmentor_forward.4} parent=5 // pred_check_branch
      %174 = sbr.rel (%p172) target = $region24
    $region23: #{generalized_segmentor_forward.4} parent=5 // pred_region
      // Predicated region
      $region25: #{generalized_segmentor_forward.4} parent=23 // pred_check
        %p175 = pneg %p50
      $region26: #{generalized_segmentor_forward.4} parent=23 // pred_check_branch
        %177 = sbr.rel (%p175) target = $region28
      $region27: #{generalized_segmentor_forward.4} parent=23 // pred_region
        %s178 = smul.u32 2, %s16
        %s179 = smul.u32 2, %s18
        %p180 = scmp.lt.s32.totalorder %s178, 3
        %s181 = scalar_select %p180, %s178, 3
        %p182 = scmp.lt.s32.totalorder %s179, 1
        %s183 = scalar_select %p182, %s179, 1
        %s184 = smul.addr %s181, 2
        %s185 = sadd.s32 %s183, %s184
        %s186 = smul.addr %s185, 4
        %s187 = scalar_lea.vmem %s0, %s186
        %s188 = smul.u32 2, %s16
        %s189 = smul.u32 2, %s18
      $region28: #{generalized_segmentor_forward.4} parent=23 // pred_fallthru
        _
    $region24: #{generalized_segmentor_forward.4} parent=5 // pred_fallthru
      _
    %p190 = scmp.le.s32.totalorder 1, %s9
    %p191 = scmp.lt.s32.totalorder %s9, 3
    %p192 = pnand %p190, %p191
    %p193 = pneg %p192
    // Predicated region
    $region29: #{generalized_segmentor_forward.4} parent=5 // pred_check
      _
    $region30: #{generalized_segmentor_forward.4} parent=5 // pred_check_branch
      %195 = sbr.rel (%p192) target = $region32
    $region31: #{generalized_segmentor_forward.4} parent=5 // pred_region
      %s196 = ssub.s32 %s9, 1
      %s197 = smul.u32 2, %s19
      %s198 = smul.u32 2, %s21
      %p199 = scmp.lt.s32.totalorder %s197, 3
      %s200 = scalar_select %p199, %s197, 3
      %p201 = scmp.lt.s32.totalorder %s198, 1
      %s202 = scalar_select %p201, %s198, 1
      %s203 = smul.addr %s200, 2
      %s204 = sadd.s32 %s202, %s203
      %s205 = smul.addr %s204, 4
      %s206 = scalar_lea.vmem %s0, %s205
      %p207 = pneg %p56
      %p208 = pneg %p53
      %s209 = smul.u32 32, %s21
      %p210 = scmp.lt.s32.totalorder %s209, 31
      %s211 = scalar_select %p210, %s209, 31
      %p212 = scmp.lt.s32.totalorder %s20, 0
      %s213 = scalar_select %p212, %s20, 0
      %s214 = sadd.s32 %s213, %s211
      %s215 = smul.addr %s214, 4
      %s216 = scalar_lea.vmem %s1, %s215
      %p217 = pneg %p84
      %p218 = pneg %p81
      %p219 = scmp.lt.s32.totalorder %s20, 0
      %s220 = scalar_select %p219, %s20, 0
      %s221 = scalar_lea.vmem %s2, %s220
      %p222 = pneg %p110
      %p223 = pneg %p107
      %p224 = pneg %p138
      %p225 = pneg %p135
      %s226 = smul.u32 2, %s19
      %p227 = scmp.lt.s32.totalorder %s226, 3
      %s228 = scalar_select %p227, %s226, 3
      %p229 = scmp.lt.s32.totalorder %s20, 0
      %s230 = scalar_select %p229, %s20, 0
      %s231 = sadd.s32 %s230, %s228
      %s232 = smul.addr %s231, 4
      %s233 = scalar_lea.vmem %s3, %s232
      %s234 = smul.u32 2, %s19
      %s235 = smul.u32 2, %s21
      %p236 = scmp.lt.s32.totalorder %s234, 3
      %s237 = scalar_select %p236, %s234, 3
      %p238 = scmp.lt.s32.totalorder %s235, 1
      %s239 = scalar_select %p238, %s235, 1
      %s240 = smul.addr %s237, 2
      %s241 = sadd.s32 %s239, %s240
      %s242 = smul.addr %s241, 4
      %s243 = scalar_lea.vmem %s0, %s242
      %s244 = smul.u32 2, %s19
      %s245 = smul.u32 2, %s21
      %s246 = smul.u32 32, %s21
      %p247 = scmp.lt.s32.totalorder %s246, 31
      %s248 = scalar_select %p247, %s246, 31
      %p249 = scmp.lt.s32.totalorder %s20, 0
      %s250 = scalar_select %p249, %s20, 0
      %s251 = sadd.s32 %s250, %s248
      %s252 = smul.addr %s251, 4
      %s253 = scalar_lea.vmem %s1, %s252
      %s254 = smul.u32 32, %s21
      %p255 = scmp.lt.s32.totalorder %s20, 0
      %s256 = scalar_select %p255, %s20, 0
      %s257 = scalar_lea.vmem %s2, %s256
      %s258 = smul.u32 2, %s19
      %p259 = scmp.lt.s32.totalorder %s258, 3
      %s260 = scalar_select %p259, %s258, 3
      %p261 = scmp.lt.s32.totalorder %s20, 0
      %s262 = scalar_select %p261, %s20, 0
      %s263 = sadd.s32 %s262, %s260
      %s264 = smul.addr %s263, 4
      %s265 = scalar_lea.vmem %s3, %s264
      %s266 = smul.u32 2, %s19
      %p268 = scmp.eq.s32.totalorder %s21, 0
      // Predicated region
      $region33: #{generalized_segmentor_forward.4} parent=31 // pred_check
        %p269 = pneg %p268
      $region34: #{generalized_segmentor_forward.4} parent=31 // pred_check_branch
        %271 = sbr.rel (%p269) target = $region36
      $region35: #{generalized_segmentor_forward.4} parent=31 // pred_region
        %272 = vst [vmem:[#allocation2] sm:$0xff] 0.0
        %273 = vst [vmem:[#allocation2 + $0x8] sm:$0xff] 0.0
      $region36: #{generalized_segmentor_forward.4} parent=31 // pred_fallthru
        _
      %v274 = vld [vmem:[#allocation2] sm:$0xff]
      %v275 = vld [vmem:[#allocation2 + $0x8] sm:$0xff]
      %v276 = vld [vmem:[%s243] sm:$0xff]
      %v277 = vld [vmem:[%s243 + $0x8] sm:$0xff]
      %v278 = vld [vmem:[%s253] sm:$0xf]
      %v279 = vld [vmem:[%s253 + $0x4] sm:$0xf]
      %v280 = vld [vmem:[%s253 + $0x8] sm:$0xf]
      %v281 = vld [vmem:[%s253 + $0xc] sm:$0xf]
      %v282 = vld [vmem:[%s253 + $0x10] sm:$0xf]
      %v283 = vld [vmem:[%s253 + $0x14] sm:$0xf]
      %v284 = vld [vmem:[%s253 + $0x18] sm:$0xf]
      %v285 = vld [vmem:[%s253 + $0x1c] sm:$0xf]
      %v286 = vld [vmem:[%s253 + $0x20] sm:$0xf]
      %v287 = vld [vmem:[%s253 + $0x24] sm:$0xf]
      %v288 = vld [vmem:[%s253 + $0x28] sm:$0xf]
      %v289 = vld [vmem:[%s253 + $0x2c] sm:$0xf]
      %v290 = vld [vmem:[%s253 + $0x30] sm:$0xf]
      %v291 = vld [vmem:[%s253 + $0x34] sm:$0xf]
      %v292 = vld [vmem:[%s253 + $0x38] sm:$0xf]
      %v293 = vld [vmem:[%s253 + $0x3c] sm:$0xf]
      %v294 = vld [vmem:[%s253 + $0x40] sm:$0xf]
      %v295 = vld [vmem:[%s253 + $0x44] sm:$0xf]
      %v296 = vld [vmem:[%s253 + $0x48] sm:$0xf]
      %v297 = vld [vmem:[%s253 + $0x4c] sm:$0xf]
      %v298 = vld [vmem:[%s253 + $0x50] sm:$0xf]
      %v299 = vld [vmem:[%s253 + $0x54] sm:$0xf]
      %v300 = vld [vmem:[%s253 + $0x58] sm:$0xf]
      %v301 = vld [vmem:[%s253 + $0x5c] sm:$0xf]
      %v302 = vld [vmem:[%s253 + $0x60] sm:$0xf]
      %v303 = vld [vmem:[%s253 + $0x64] sm:$0xf]
      %v304 = vld [vmem:[%s253 + $0x68] sm:$0xf]
      %v305 = vld [vmem:[%s253 + $0x6c] sm:$0xf]
      %v306 = vld [vmem:[%s253 + $0x70] sm:$0xf]
      %v307 = vld [vmem:[%s253 + $0x74] sm:$0xf]
      %v308 = vld [vmem:[%s253 + $0x78] sm:$0xf]
      %v309 = vld [vmem:[%s253 + $0x7c] sm:$0xf]
      %v312 = vunpack.c.l.b16 %v276
      %v313 = vunpack.c.h.b16 %v276
      %v314 = vunpack.c.l.b16 %v277
      %v315 = vunpack.c.h.b16 %v277
      %v316 = vpack.c.b16 %v314, %v312
      %v317 = vpack.c.b16 %v315, %v313
      %v352 = vunpack.c.l.b16 %v278
      %v353 = vunpack.c.l.b16 %v279
      %v354 = vunpack.c.l.b16 %v280
      %v355 = vunpack.c.l.b16 %v281
      %v356 = vunpack.c.l.b16 %v282
      %v357 = vunpack.c.l.b16 %v283
      %v358 = vunpack.c.l.b16 %v284
      %v359 = vunpack.c.l.b16 %v285
      %v360 = vunpack.c.l.b16 %v286
      %v361 = vunpack.c.l.b16 %v287
      %v362 = vunpack.c.l.b16 %v288
      %v363 = vunpack.c.l.b16 %v289
      %v364 = vunpack.c.l.b16 %v290
      %v365 = vunpack.c.l.b16 %v291
      %v366 = vunpack.c.l.b16 %v292
      %v367 = vunpack.c.l.b16 %v293
      %v368 = vunpack.c.l.b16 %v294
      %v369 = vunpack.c.l.b16 %v295
      %v370 = vunpack.c.l.b16 %v296
      %v371 = vunpack.c.l.b16 %v297
      %v372 = vunpack.c.l.b16 %v298
      %v373 = vunpack.c.l.b16 %v299
      %v374 = vunpack.c.l.b16 %v300
      %v375 = vunpack.c.l.b16 %v301
      %v376 = vunpack.c.l.b16 %v302
      %v377 = vunpack.c.l.b16 %v303
      %v378 = vunpack.c.l.b16 %v304
      %v379 = vunpack.c.l.b16 %v305
      %v380 = vunpack.c.l.b16 %v306
      %v381 = vunpack.c.l.b16 %v307
      %v382 = vunpack.c.l.b16 %v308
      %v383 = vunpack.c.l.b16 %v309
      %v384 = vpack.c.b16 %v353, %v352
      %v385 = vpack.c.b16 %v355, %v354
      %v386 = vpack.c.b16 %v357, %v356
      %v387 = vpack.c.b16 %v359, %v358
      %v388 = vpack.c.b16 %v361, %v360
      %v389 = vpack.c.b16 %v363, %v362
      %v390 = vpack.c.b16 %v365, %v364
      %v391 = vpack.c.b16 %v367, %v366
      %v392 = vpack.c.b16 %v369, %v368
      %v393 = vpack.c.b16 %v371, %v370
      %v394 = vpack.c.b16 %v373, %v372
      %v395 = vpack.c.b16 %v375, %v374
      %v396 = vpack.c.b16 %v377, %v376
      %v397 = vpack.c.b16 %v379, %v378
      %v398 = vpack.c.b16 %v381, %v380
      %v399 = vpack.c.b16 %v383, %v382
      %416 = vmatprep.subr.bf16.mxu0 0
      %417 = vmatpush1.bf16.msra.mxu0 %v384
      %418 = vmatprep.subr.bf16.mxu0 0
      %419 = vmatpush1.bf16.msra.mxu0 %v385
      %420 = vmatprep.subr.bf16.mxu0 0
      %421 = vmatpush1.bf16.msra.mxu0 %v386
      %422 = vmatprep.subr.bf16.mxu0 0
      %423 = vmatpush1.bf16.msra.mxu0 %v387
      %424 = vmatprep.subr.bf16.mxu0 0
      %425 = vmatpush1.bf16.msra.mxu0 %v388
      %426 = vmatprep.subr.bf16.mxu0 0
      %427 = vmatpush1.bf16.msra.mxu0 %v389
      %428 = vmatprep.subr.bf16.mxu0 0
      %429 = vmatpush1.bf16.msra.mxu0 %v390
      %430 = vmatprep.subr.bf16.mxu0 0
      %431 = vmatpush1.bf16.msra.mxu0 %v391
      %432 = vmatprep.subr.bf16.mxu0 0
      %433 = vmatpush1.bf16.msra.mxu0 %v392
      %434 = vmatprep.subr.bf16.mxu0 0
      %435 = vmatpush1.bf16.msra.mxu0 %v393
      %436 = vmatprep.subr.bf16.mxu0 0
      %437 = vmatpush1.bf16.msra.mxu0 %v394
      %438 = vmatprep.subr.bf16.mxu0 0
      %439 = vmatpush1.bf16.msra.mxu0 %v395
      %440 = vmatprep.subr.bf16.mxu0 0
      %441 = vmatpush1.bf16.msra.mxu0 %v396
      %442 = vmatprep.subr.bf16.mxu0 0
      %443 = vmatpush1.bf16.msra.mxu0 %v397
      %444 = vmatprep.subr.bf16.mxu0 0
      %445 = vmatpush1.bf16.msra.mxu0 %v398
      %446 = vmatprep.subr.bf16.mxu0 0
      %447 = vmatpush1.bf16.msra.mxu0 %v399
      %448 = vmatprep.mubr.bf16.mxu0 %v317
      %449 = vmatmul.mubr.bf16.gmra.mrb[0].mxu0 %v316
      %v450 = vpop.f32.mrb[0].mxu0
      %v451 = vadd.f32 0.0, %v450
      %v452 = vpop.f32.mrb[0].mxu0
      %v453 = vpop.f32.mrb[0].mxu0
      %v454 = vadd.f32 0.0, %v453
      %v455 = vpop.f32.mrb[0].mxu0
      %456 = vdwg.mxu0
      %v457 = vadd.f32 %v274, %v451
      %v458 = vadd.f32 %v275, %v454
      %459 = vst [vmem:[#allocation2] sm:$0xff] %v457
      %460 = vst [vmem:[#allocation2 + $0x8] sm:$0xff] %v458
      // Predicated region
      $region37: #{generalized_segmentor_forward.4} parent=31 // pred_check
        %p461 = pneg %p268
      $region38: #{generalized_segmentor_forward.4} parent=31 // pred_check_branch
        %463 = sbr.rel (%p461) target = $region40
      $region39: #{generalized_segmentor_forward.4} parent=31 // pred_region
        %v464 = vld [vmem:[#allocation2] sm:$0xff]
        %v465 = vld [vmem:[#allocation2 + $0x8] sm:$0xff]
        %v466 = vld [vmem:[%s257] sm:$0x1]
        %v468 = vlaneseq
        %v469 = vshrl.u32 %v468, 7
        %v470 = vsub.s32 0, %v469
        %v471 = vrot.slane %v466, %v470
        %v473 = vadd.f32 %v464, %v471
        %v474 = vadd.f32 %v465, %v471
        %v475 = vmax.f32 %v473, 0.0
        %v476 = vmax.f32 %v474, 0.0
        %v477 = vpack.c.bf16 %v476, %v475
        %v479 = vunpack.c.l.b16 %v477
        %v480 = vunpack.c.h.b16 %v477
        %v481 = vpack.c.b16 %v479, %v479
        %v482 = vpack.c.b16 %v480, %v480
        %485 = vst [vmem:[%s265] sm:$0xf] %v481
        %486 = vst [vmem:[%s265 + $0x4] sm:$0xf] %v482
      $region40: #{generalized_segmentor_forward.4} parent=31 // pred_fallthru
        _
      %s487 = smul.u32 2, %s19
      %p488 = scmp.lt.s32.totalorder %s487, 3
      %s489 = scalar_select %p488, %s487, 3
      %p490 = scmp.lt.s32.totalorder %s20, 0
      %s491 = scalar_select %p490, %s20, 0
      %s492 = sadd.s32 %s491, %s489
      %s493 = smul.addr %s492, 4
      %s494 = scalar_lea.vmem %s3, %s493
      // Predicated region
      $region41: #{generalized_segmentor_forward.4} parent=31 // pred_check
        %p495 = pneg %p135
      $region42: #{generalized_segmentor_forward.4} parent=31 // pred_check_branch
        %497 = sbr.rel (%p495) target = $region44
      $region43: #{generalized_segmentor_forward.4} parent=31 // pred_region
        %s498 = smul.u32 2, %s19
      $region44: #{generalized_segmentor_forward.4} parent=31 // pred_fallthru
        _
    $region32: #{generalized_segmentor_forward.4} parent=5 // pred_fallthru
      _
    %p499 = scmp.le.s32.totalorder 2, %s9
    // Predicated region
    $region45: #{generalized_segmentor_forward.4} parent=5 // pred_check
      %p500 = pneg %p499
    $region46: #{generalized_segmentor_forward.4} parent=5 // pred_check_branch
      %502 = sbr.rel (%p500) target = $region48
    $region47: #{generalized_segmentor_forward.4} parent=5 // pred_region
      %s503 = ssub.s32 %s9, 2
      // Predicated region
      $region49: #{generalized_segmentor_forward.4} parent=47 // pred_check
        %p504 = pneg %p141
      $region50: #{generalized_segmentor_forward.4} parent=47 // pred_check_branch
        %506 = sbr.rel (%p504) target = $region52
      $region51: #{generalized_segmentor_forward.4} parent=47 // pred_region
        %s507 = smul.u32 2, %s22
        %p508 = scmp.lt.s32.totalorder %s507, 3
        %s509 = scalar_select %p508, %s507, 3
        %p510 = scmp.lt.s32.totalorder %s23, 0
        %s511 = scalar_select %p510, %s23, 0
        %s512 = sadd.s32 %s511, %s509
        %s513 = smul.addr %s512, 4
        %s514 = scalar_lea.vmem %s3, %s513
      $region52: #{generalized_segmentor_forward.4} parent=47 // pred_fallthru
        _
    $region48: #{generalized_segmentor_forward.4} parent=5 // pred_fallthru
      _
  $region6: #{generalized_segmentor_forward.4} parent=0 // loop_footer
    %s13 = sadd.s32 1, %s9
  $region7: #{generalized_segmentor_forward.4} parent=0 // loop_footer_branch
    %8 = sbr.rel target = $region3
  $region8: #{generalized_segmentor_forward.4} parent=0 // loop_exit
    _

// kernel: generalized_segmentor_forward.5
$region0: #{generalized_segmentor_forward.5}
  #allocation0 [shape = 'u32[]', space=smem, size = 0x4, offset = 0x4, fixed_abs, tag = 'smem constant byte address 0x4 - core index']
  #allocation1 [shape = 'u32[144,128]{1,0:T(1,128)}', space=vmem, size = 0x12000, scoped, tag = 'internal scratch']
  #allocation2 [shape = 'f32[16,128]{1,0:T(8,128)}', space=vmem, size = 0x2000, scoped, tag = 'scratch operand']
  %s0 = inlined_call_operand.vmem [shape: bf16[32,640], index: 0, kind: input, shape index: {}]
  %s1 = inlined_call_operand.vmem [shape: bf16[640,128], index: 1, kind: input, shape index: {}]
  %s2 = inlined_call_operand.vmem [shape: f32[1,128], index: 2, kind: input, shape index: {}]
  %s3 = inlined_call_operand.vmem [shape: bf16[128,128], index: 3, kind: input, shape index: {}]
  %s4 = inlined_call_operand.vmem [shape: f32[1,128], index: 4, kind: input, shape index: {}]
  %s5 = inlined_call_operand.vmem [shape: f32[32,128], index: 5, kind: output, shape index: {}]
  %s6 = sld [smem:[#allocation0]]
  $region102: #{generalized_segmentor_forward.5} parent=0
    _
  %s8 = ssub.s32 1, %s6
  %s9 = scalar_select 0, %s8, %s6
  $region1: #{generalized_segmentor_forward.5} parent=0
    #allocation3 [shape = 'u8[8192]{0}', space=vmem, size = 0x2000, scoped, tag = 'input window, operand 0']
    loop: start=0, step=1, limit=12
    $region2: #{generalized_segmentor_forward.5} parent=1 // loop_pre_header
      _
    $region3: #{generalized_segmentor_forward.5} parent=1 // loop_header
      %s11 = sphi 0, %s15
      %p12 = scmp.ge.s32.totalorder %s11, 12
      %s18 = sphi 0, %s30
      %s19 = sphi 0, %s26
      %s20 = sphi 0, %s18
      %s21 = sphi 0, %s19
      %s22 = sphi 0, %s20
      %s23 = sphi 0, %s21
      %s35 = sphi 0, %s37
      %s38 = sphi 0, %s35
      %s39 = sphi 0, %s38
      %s55 = sphi 0, %s39
      %s61 = sphi 0, %s63
      %s64 = sphi 0, %s61
      %s65 = sphi 0, %s64
      %s81 = sphi 0, %s65
      %s85 = sphi 0, %s85
      %s87 = sphi 0, %s85
      %s88 = sphi 0, %s87
      %s102 = sphi 0, %s88
      %s106 = sphi 0, %s106
      %s108 = sphi 0, %s106
      %s109 = sphi 0, %s108
      %s123 = sphi 0, %s109
      %s127 = sphi 0, %s127
      %s129 = sphi 0, %s127
      %s130 = sphi 0, %s129
      %s144 = sphi 0, %s130
      %s150 = sphi 0, %s152
      %s153 = sphi 0, %s150
      %s154 = sphi 0, %s153
      %s170 = sphi 0, %s154
    $region4: #{generalized_segmentor_forward.5} parent=1 // loop_header_branch
      %14 = sbr.rel (%p12) target = $region8
    $region5: #{generalized_segmentor_forward.5} parent=1 // loop_body
      %s16 = ssub.s32 %s11, 1
      %s17 = ssub.s32 %s11, 2
      %s24 = sadd.s32 1, %s19
      %p25 = scmp.ge.s32.totalorder %s24, 5
      %s26 = scalar_select %p25, 0, %s24
      %s27 = sadd.s32 1, %s18
      %s28 = scalar_select %p25, %s27, %s18
      %p29 = scmp.ge.s32.totalorder %s28, 2
      %s30 = scalar_select %p29, 0, %s28
      %s31 = ssub.s32 %s18, %s30
      %s32 = ssub.s32 %s19, %s26
      %s33 = sor.u32 %s31, %s32
      %p34 = scmp.eq.s32.totalorder %s33, 0
      %s36 = sadd.s32 %s35, 1
      %s37 = scalar_select %p34, %s35, %s36
      %p40 = pneg %p34
      %p41 = scmp.eq.s32.totalorder %s11, 9
      %p42 = por %p40, %p41
      %p43 = scmp.ne.s32.totalorder %s35, %s38
      %p44 = scmp.eq.s32.totalorder %s11, 0
      %p45 = por %p43, %p44
      %p46 = scmp.ne.s32.totalorder %s35, %s38
      %p47 = scmp.eq.s32.totalorder %s16, 9
      %p48 = por %p46, %p47
      %p49 = scmp.ne.s32.totalorder %s38, %s39
      %p50 = scmp.eq.s32.totalorder %s16, 0
      %p51 = por %p49, %p50
      %p52 = scmp.ne.s32.totalorder %s38, %s39
      %p53 = scmp.eq.s32.totalorder %s17, 9
      %p54 = por %p52, %p53
      %p56 = scmp.ne.s32.totalorder %s39, %s55
      %p57 = scmp.eq.s32.totalorder %s17, 0
      %p58 = por %p56, %p57
      %s59 = ssub.s32 %s19, %s26
      %p60 = scmp.eq.s32.totalorder %s59, 0
      %s62 = sadd.s32 %s61, 1
      %s63 = scalar_select %p60, %s61, %s62
      %p66 = pneg %p60
      %p67 = scmp.eq.s32.totalorder %s11, 9
      %p68 = por %p66, %p67
      %p69 = scmp.ne.s32.totalorder %s61, %s64
      %p70 = scmp.eq.s32.totalorder %s11, 0
      %p71 = por %p69, %p70
      %p72 = scmp.ne.s32.totalorder %s61, %s64
      %p73 = scmp.eq.s32.totalorder %s16, 9
      %p74 = por %p72, %p73
      %p75 = scmp.ne.s32.totalorder %s64, %s65
      %p76 = scmp.eq.s32.totalorder %s16, 0
      %p77 = por %p75, %p76
      %p78 = scmp.ne.s32.totalorder %s64, %s65
      %p79 = scmp.eq.s32.totalorder %s17, 9
      %p80 = por %p78, %p79
      %p82 = scmp.ne.s32.totalorder %s65, %s81
      %p83 = scmp.eq.s32.totalorder %s17, 0
      %p84 = por %p82, %p83
      %s86 = sadd.s32 %s85, 1
      %p89 = scmp.eq.s32.totalorder %s11, 9
      %p90 = scmp.ne.s32.totalorder %s85, %s87
      %p91 = scmp.eq.s32.totalorder %s11, 0
      %p92 = por %p90, %p91
      %p93 = scmp.ne.s32.totalorder %s85, %s87
      %p94 = scmp.eq.s32.totalorder %s16, 9
      %p95 = por %p93, %p94
      %p96 = scmp.ne.s32.totalorder %s87, %s88
      %p97 = scmp.eq.s32.totalorder %s16, 0
      %p98 = por %p96, %p97
      %p99 = scmp.ne.s32.totalorder %s87, %s88
      %p100 = scmp.eq.s32.totalorder %s17, 9
      %p101 = por %p99, %p100
      %p103 = scmp.ne.s32.totalorder %s88, %s102
      %p104 = scmp.eq.s32.totalorder %s17, 0
      %p105 = por %p103, %p104
      %s107 = sadd.s32 %s106, 1
      %p110 = scmp.eq.s32.totalorder %s11, 9
      %p111 = scmp.ne.s32.totalorder %s106, %s108
      %p112 = scmp.eq.s32.totalorder %s11, 0
      %p113 = por %p111, %p112
      %p114 = scmp.ne.s32.totalorder %s106, %s108
      %p115 = scmp.eq.s32.totalorder %s16, 9
      %p116 = por %p114, %p115
      %p117 = scmp.ne.s32.totalorder %s108, %s109
      %p118 = scmp.eq.s32.totalorder %s16, 0
      %p119 = por %p117, %p118
      %p120 = scmp.ne.s32.totalorder %s108, %s109
      %p121 = scmp.eq.s32.totalorder %s17, 9
      %p122 = por %p120, %p121
      %p124 = scmp.ne.s32.totalorder %s109, %s123
      %p125 = scmp.eq.s32.totalorder %s17, 0
      %p126 = por %p124, %p125
      %s128 = sadd.s32 %s127, 1
      %p131 = scmp.eq.s32.totalorder %s11, 9
      %p132 = scmp.ne.s32.totalorder %s127, %s129
      %p133 = scmp.eq.s32.totalorder %s11, 0
      %p134 = por %p132, %p133
      %p135 = scmp.ne.s32.totalorder %s127, %s129
      %p136 = scmp.eq.s32.totalorder %s16, 9
      %p137 = por %p135, %p136
      %p138 = scmp.ne.s32.totalorder %s129, %s130
      %p139 = scmp.eq.s32.totalorder %s16, 0
      %p140 = por %p138, %p139
      %p141 = scmp.ne.s32.totalorder %s129, %s130
      %p142 = scmp.eq.s32.totalorder %s17, 9
      %p143 = por %p141, %p142
      %p145 = scmp.ne.s32.totalorder %s130, %s144
      %p146 = scmp.eq.s32.totalorder %s17, 0
      %p147 = por %p145, %p146
      %s148 = ssub.s32 %s18, %s30
      %p149 = scmp.eq.s32.totalorder %s148, 0
      %s151 = sadd.s32 %s150, 1
      %s152 = scalar_select %p149, %s150, %s151
      %p155 = pneg %p149
      %p156 = scmp.eq.s32.totalorder %s11, 9
      %p157 = por %p155, %p156
      %p158 = scmp.ne.s32.totalorder %s150, %s153
      %p159 = scmp.eq.s32.totalorder %s11, 0
      %p160 = por %p158, %p159
      %p161 = scmp.ne.s32.totalorder %s150, %s153
      %p162 = scmp.eq.s32.totalorder %s16, 9
      %p163 = por %p161, %p162
      %p164 = scmp.ne.s32.totalorder %s153, %s154
      %p165 = scmp.eq.s32.totalorder %s16, 0
      %p166 = por %p164, %p165
      %p167 = scmp.ne.s32.totalorder %s153, %s154
      %p168 = scmp.eq.s32.totalorder %s17, 9
      %p169 = por %p167, %p168
      %p171 = scmp.ne.s32.totalorder %s154, %s170
      %p172 = scmp.eq.s32.totalorder %s17, 0
      %p173 = por %p171, %p172
      %p174 = scmp.le.s32.totalorder 1, %s11
      %p175 = scmp.lt.s32.totalorder %s11, 11
      %p176 = pnand %p174, %p175
      %p177 = pneg %p176
      // Predicated region
      $region9: #{generalized_segmentor_forward.5} parent=5 // pred_check
        _
      $region10: #{generalized_segmentor_forward.5} parent=5 // pred_check_branch
        %179 = sbr.rel (%p176) target = $region12
      $region11: #{generalized_segmentor_forward.5} parent=5 // pred_region
        %s180 = ssub.s32 %s11, 1
        // Predicated region
        $region13: #{generalized_segmentor_forward.5} parent=11 // pred_check
          %p181 = pneg %p98
        $region14: #{generalized_segmentor_forward.5} parent=11 // pred_check_branch
          %183 = sbr.rel (%p181) target = $region16
        $region15: #{generalized_segmentor_forward.5} parent=11 // pred_region
          _
        $region16: #{generalized_segmentor_forward.5} parent=11 // pred_fallthru
          _
        // Predicated region
        $region17: #{generalized_segmentor_forward.5} parent=11 // pred_check
          %p184 = pneg %p119
        $region18: #{generalized_segmentor_forward.5} parent=11 // pred_check_branch
          %186 = sbr.rel (%p184) target = $region20
        $region19: #{generalized_segmentor_forward.5} parent=11 // pred_region
          _
        $region20: #{generalized_segmentor_forward.5} parent=11 // pred_fallthru
          _
        // Predicated region
        $region21: #{generalized_segmentor_forward.5} parent=11 // pred_check
          %p187 = pneg %p140
        $region22: #{generalized_segmentor_forward.5} parent=11 // pred_check_branch
          %189 = sbr.rel (%p187) target = $region24
        $region23: #{generalized_segmentor_forward.5} parent=11 // pred_region
          _
        $region24: #{generalized_segmentor_forward.5} parent=11 // pred_fallthru
          _
      $region12: #{generalized_segmentor_forward.5} parent=5 // pred_fallthru
        _
      %p190 = scmp.lt.s32.totalorder %s11, 10
      // Predicated region
      $region25: #{generalized_segmentor_forward.5} parent=5 // pred_check
        %p191 = pneg %p190
      $region26: #{generalized_segmentor_forward.5} parent=5 // pred_check_branch
        %193 = sbr.rel (%p191) target = $region28
      $region27: #{generalized_segmentor_forward.5} parent=5 // pred_region
        // Predicated region
        $region29: #{generalized_segmentor_forward.5} parent=27 // pred_check
          %p194 = pneg %p45
        $region30: #{generalized_segmentor_forward.5} parent=27 // pred_check_branch
          %196 = sbr.rel (%p194) target = $region32
        $region31: #{generalized_segmentor_forward.5} parent=27 // pred_region
          %s197 = sand.u32 %s35, 1
          %s198 = sand.u32 %s35, 1
          %s199 = smul.addr %s198, 8
          %s200 = scalar_lea.vmem [#allocation3], %s199
          %s201 = smul.u32 2, %s18
          %s202 = smul.addr %s201, 5
          %s203 = sadd.s32 %s19, %s202
          %s204 = smul.addr %s203, 4
          %s205 = scalar_lea.vmem %s0, %s204
          // Predicated region
          $region33: #{generalized_segmentor_forward.5} parent=31 // pred_check
            _
          $region34: #{generalized_segmentor_forward.5} parent=31 // pred_check_branch
            %207 = sbr.rel (0) target = $region36
          $region35: #{generalized_segmentor_forward.5} parent=31 // pred_region
            // Predicated region
            $region37: #{generalized_segmentor_forward.5} parent=35 // pred_check
              _
            $region38: #{generalized_segmentor_forward.5} parent=35 // pred_check_branch
              %209 = sbr.rel target = $region40
            $region39: #{generalized_segmentor_forward.5} parent=35 // pred_region
              // Predicated region
              $region52: #{generalized_segmentor_forward.5} parent=39 // pred_check
                _
              $region53: #{generalized_segmentor_forward.5} parent=39 // pred_check_branch
                %226 = sbr.rel (0) target = $region55
              $region54: #{generalized_segmentor_forward.5} parent=39 // pred_region
                loop: start=0, step=1, limit=1
                $region56: #{generalized_segmentor_forward.5} parent=54 // loop_pre_header
                  _
                $region57: #{generalized_segmentor_forward.5} parent=54 // loop_header
                  %s228 = sphi 0, %s232
                  %p229 = scmp.ge.s32.totalorder %s228, 1
                  %s233 = sphi %s205, %s205
                  %s234 = sphi %s200, %s200
                $region58: #{generalized_segmentor_forward.5} parent=54 // loop_header_branch
                  %231 = sbr.rel (%p229) target = $region62
                $region59: #{generalized_segmentor_forward.5} parent=54 // loop_body
                  _
                $region60: #{generalized_segmentor_forward.5} parent=54 // loop_footer
                  %s232 = sadd.s32 1, %s228
                $region61: #{generalized_segmentor_forward.5} parent=54 // loop_footer_branch
                  %227 = sbr.rel target = $region57
                $region62: #{generalized_segmentor_forward.5} parent=54 // loop_exit
                  _
                loop: start=0, step=1, limit=1
                $region63: #{generalized_segmentor_forward.5} parent=54 // loop_pre_header
                  _
                $region64: #{generalized_segmentor_forward.5} parent=54 // loop_header
                  %s237 = sphi 0, %s241
                  %p238 = scmp.ge.s32.totalorder %s237, 1
                  %s242 = sphi %s205, %s205
                  %s243 = sphi %s200, %s200
                $region65: #{generalized_segmentor_forward.5} parent=54 // loop_header_branch
                  %240 = sbr.rel (%p238) target = $region69
                $region66: #{generalized_segmentor_forward.5} parent=54 // loop_body
                  %v244 = vld [vmem:[%s242] sm:$0xf]
                  %245 = vst [vmem:[%s243] sm:$0xf] %v244
                  %v246 = vld [vmem:[%s242 + $0x14] sm:$0xf]
                  %247 = vst [vmem:[%s243 + $0x4] sm:$0xf] %v246
                $region67: #{generalized_segmentor_forward.5} parent=54 // loop_footer
                  %s241 = sadd.s32 1, %s237
                $region68: #{generalized_segmentor_forward.5} parent=54 // loop_footer_branch
                  %236 = sbr.rel target = $region64
                $region69: #{generalized_segmentor_forward.5} parent=54 // loop_exit
                  _
              $region55: #{generalized_segmentor_forward.5} parent=39 // pred_fallthru
                _
            $region40: #{generalized_segmentor_forward.5} parent=35 // pred_fallthru
              _
            // Predicated region
            $region41: #{generalized_segmentor_forward.5} parent=35 // pred_check
              _
            $region42: #{generalized_segmentor_forward.5} parent=35 // pred_check_branch
              %211 = sbr.rel (0) target = $region44
            $region43: #{generalized_segmentor_forward.5} parent=35 // pred_region
              loop: start=0, step=1, limit=1
              $region45: #{generalized_segmentor_forward.5} parent=43 // loop_pre_header
                _
              $region46: #{generalized_segmentor_forward.5} parent=43 // loop_header
                %s214 = sphi 0, %s218
                %p215 = scmp.ge.s32.totalorder %s214, 1
                %s219 = sphi %s205, %s205
                %s220 = sphi %s200, %s200
              $region47: #{generalized_segmentor_forward.5} parent=43 // loop_header_branch
                %217 = sbr.rel (%p215) target = $region51
              $region48: #{generalized_segmentor_forward.5} parent=43 // loop_body
                %v221 = vld [vmem:[%s219] sm:$0xf]
                %222 = vst [vmem:[%s220] sm:$0xf] %v221
                %v223 = vld [vmem:[%s219 + $0x14] sm:$0xf]
                %224 = vst [vmem:[%s220 + $0x4] sm:$0xf] %v223
              $region49: #{generalized_segmentor_forward.5} parent=43 // loop_footer
                %s218 = sadd.s32 1, %s214
              $region50: #{generalized_segmentor_forward.5} parent=43 // loop_footer_branch
                %213 = sbr.rel target = $region46
              $region51: #{generalized_segmentor_forward.5} parent=43 // loop_exit
                _
            $region44: #{generalized_segmentor_forward.5} parent=35 // pred_fallthru
              _
          $region36: #{generalized_segmentor_forward.5} parent=31 // pred_fallthru
            _
          %248 = vnop
        $region32: #{generalized_segmentor_forward.5} parent=27 // pred_fallthru
          _
        // Predicated region
        $region70: #{generalized_segmentor_forward.5} parent=27 // pred_check
          %p249 = pneg %p71
        $region71: #{generalized_segmentor_forward.5} parent=27 // pred_check_branch
          %251 = sbr.rel (%p249) target = $region73
        $region72: #{generalized_segmentor_forward.5} parent=27 // pred_region
          %s252 = smul.u32 16, %s19
          %p253 = scmp.lt.s32.totalorder %s252, 79
          %s254 = scalar_select %p253, %s252, 79
          %s255 = smul.addr %s254, 4
          %s256 = scalar_lea.vmem %s1, %s255
          %s257 = smul.u32 16, %s19
        $region73: #{generalized_segmentor_forward.5} parent=27 // pred_fallthru
          _
      $region28: #{generalized_segmentor_forward.5} parent=5 // pred_fallthru
        _
      %p258 = scmp.le.s32.totalorder 1, %s11
      %p259 = scmp.lt.s32.totalorder %s11, 11
      %p260 = pnand %p258, %p259
      %p261 = pneg %p260
      // Predicated region
      $region74: #{generalized_segmentor_forward.5} parent=5 // pred_check
        _
      $region75: #{generalized_segmentor_forward.5} parent=5 // pred_check_branch
        %263 = sbr.rel (%p260) target = $region77
      $region76: #{generalized_segmentor_forward.5} parent=5 // pred_region
        %s264 = ssub.s32 %s11, 1
        %s265 = sand.u32 %s38, 1
        %s266 = sand.u32 %s38, 1
        %s267 = smul.addr %s266, 8
        %s268 = scalar_lea.vmem [#allocation3], %s267
        // Predicated region
        $region78: #{generalized_segmentor_forward.5} parent=76 // pred_check
          %p269 = pneg %p51
        $region79: #{generalized_segmentor_forward.5} parent=76 // pred_check_branch
          %271 = sbr.rel (%p269) target = $region81
        $region80: #{generalized_segmentor_forward.5} parent=76 // pred_region
          _
        $region81: #{generalized_segmentor_forward.5} parent=76 // pred_fallthru
          _
        %s272 = sand.u32 %s38, 1
        %s273 = sand.u32 %s38, 1
        %s274 = smul.addr %s273, 8
        %s275 = scalar_lea.vmem [#allocation3], %s274
        %p276 = pneg %p51
        %p277 = pneg %p48
        %s278 = smul.u32 16, %s21
        %p279 = scmp.lt.s32.totalorder %s278, 79
        %s280 = scalar_select %p279, %s278, 79
        %s281 = smul.addr %s280, 4
        %s282 = scalar_lea.vmem %s1, %s281
        %p283 = pneg %p77
        %p284 = pneg %p74
        %p285 = pneg %p98
        %p286 = pneg %p95
        %p287 = pneg %p119
        %p288 = pneg %p116
        %p289 = pneg %p140
        %p290 = pneg %p137
        %p291 = pneg %p166
        %p292 = pneg %p163
        %s293 = smul.u32 2, %s20
        %p294 = scmp.lt.s32.totalorder %s293, 3
        %s295 = scalar_select %p294, %s293, 3
        %s296 = smul.addr %s295, 8
        %s297 = scalar_lea.vmem %s5, %s296
        %s298 = smul.u32 2, %s20
        %s299 = smul.u32 16, %s21
        %p300 = scmp.lt.s32.totalorder %s299, 79
        %s301 = scalar_select %p300, %s299, 79
        %s302 = smul.addr %s301, 4
        %s303 = scalar_lea.vmem %s1, %s302
        %s304 = smul.u32 16, %s21
        %s305 = smul.u32 2, %s20
        %p306 = scmp.lt.s32.totalorder %s305, 3
        %s307 = scalar_select %p306, %s305, 3
        %s308 = smul.addr %s307, 8
        %s309 = scalar_lea.vmem %s5, %s308
        %s310 = smul.u32 2, %s20
        %p312 = scmp.eq.s32.totalorder %s21, 0
        // Predicated region
        $region82: #{generalized_segmentor_forward.5} parent=76 // pred_check
          %p313 = pneg %p312
        $region83: #{generalized_segmentor_forward.5} parent=76 // pred_check_branch
          %315 = sbr.rel (%p313) target = $region85
        $region84: #{generalized_segmentor_forward.5} parent=76 // pred_region
          %316 = vst [vmem:[#allocation2] sm:$0xff] 0.0
          %317 = vst [vmem:[#allocation2 + $0x8] sm:$0xff] 0.0
        $region85: #{generalized_segmentor_forward.5} parent=76 // pred_fallthru
          _
        %v318 = vld [vmem:[#allocation2] sm:$0xff]
        %v319 = vld [vmem:[#allocation2 + $0x8] sm:$0xff]
        %v320 = vld [vmem:[%s268] sm:$0xf]
        %v321 = vld [vmem:[%s268 + $0x4] sm:$0xf]
        %v322 = vld [vmem:[%s303] sm:$0xf]
        %v323 = vld [vmem:[%s303 + $0x4] sm:$0xf]
        %v324 = vld [vmem:[%s303 + $0x8] sm:$0xf]
        %v325 = vld [vmem:[%s303 + $0xc] sm:$0xf]
        %v326 = vld [vmem:[%s303 + $0x10] sm:$0xf]
        %v327 = vld [vmem:[%s303 + $0x14] sm:$0xf]
        %v328 = vld [vmem:[%s303 + $0x18] sm:$0xf]
        %v329 = vld [vmem:[%s303 + $0x1c] sm:$0xf]
        %v330 = vld [vmem:[%s303 + $0x20] sm:$0xf]
        %v331 = vld [vmem:[%s303 + $0x24] sm:$0xf]
        %v332 = vld [vmem:[%s303 + $0x28] sm:$0xf]
        %v333 = vld [vmem:[%s303 + $0x2c] sm:$0xf]
        %v334 = vld [vmem:[%s303 + $0x30] sm:$0xf]
        %v335 = vld [vmem:[%s303 + $0x34] sm:$0xf]
        %v336 = vld [vmem:[%s303 + $0x38] sm:$0xf]
        %v337 = vld [vmem:[%s303 + $0x3c] sm:$0xf]
        %v340 = vunpack.c.l.b16 %v320
        %v341 = vunpack.c.l.b16 %v321
        %v342 = vpack.c.b16 %v341, %v340
        %v360 = vunpack.c.l.b16 %v322
        %v361 = vunpack.c.l.b16 %v323
        %v362 = vunpack.c.l.b16 %v324
        %v363 = vunpack.c.l.b16 %v325
        %v364 = vunpack.c.l.b16 %v326
        %v365 = vunpack.c.l.b16 %v327
        %v366 = vunpack.c.l.b16 %v328
        %v367 = vunpack.c.l.b16 %v329
        %v368 = vunpack.c.l.b16 %v330
        %v369 = vunpack.c.l.b16 %v331
        %v370 = vunpack.c.l.b16 %v332
        %v371 = vunpack.c.l.b16 %v333
        %v372 = vunpack.c.l.b16 %v334
        %v373 = vunpack.c.l.b16 %v335
        %v374 = vunpack.c.l.b16 %v336
        %v375 = vunpack.c.l.b16 %v337
        %v376 = vpack.c.b16 %v361, %v360
        %v377 = vpack.c.b16 %v363, %v362
        %v378 = vpack.c.b16 %v365, %v364
        %v379 = vpack.c.b16 %v367, %v366
        %v380 = vpack.c.b16 %v369, %v368
        %v381 = vpack.c.b16 %v371, %v370
        %v382 = vpack.c.b16 %v373, %v372
        %v383 = vpack.c.b16 %v375, %v374
        %392 = vmatprep.subr.bf16.mxu0 0
        %393 = vmatpush1.bf16.msra.mxu0 %v376
        %394 = vmatprep.subr.bf16.mxu0 0
        %395 = vmatpush1.bf16.msra.mxu0 %v377
        %396 = vmatprep.subr.bf16.mxu0 0
        %397 = vmatpush1.bf16.msra.mxu0 %v378
        %398 = vmatprep.subr.bf16.mxu0 0
        %399 = vmatpush1.bf16.msra.mxu0 %v379
        %400 = vmatprep.subr.bf16.mxu0 0
        %401 = vmatpush1.bf16.msra.mxu0 %v380
        %402 = vmatprep.subr.bf16.mxu0 0
        %403 = vmatpush1.bf16.msra.mxu0 %v381
        %404 = vmatprep.subr.bf16.mxu0 0
        %405 = vmatpush1.bf16.msra.mxu0 %v382
        %406 = vmatprep.subr.bf16.mxu0 0
        %407 = vmatpush1.bf16.msra.mxu0 %v383
        %408 = vmatprep.subr.bf16.mxu0 0
        %409 = vmatpush1.bf16.msra.mxu0 0
        %410 = vmatprep.subr.bf16.mxu0 0
        %411 = vmatpush1.bf16.msra.mxu0 0
        %412 = vmatprep.subr.bf16.mxu0 0
        %413 = vmatpush1.bf16.msra.mxu0 0
        %414 = vmatprep.subr.bf16.mxu0 0
        %415 = vmatpush1.bf16.msra.mxu0 0
        %416 = vmatprep.subr.bf16.mxu0 0
        %417 = vmatpush1.bf16.msra.mxu0 0
        %418 = vmatprep.subr.bf16.mxu0 0
        %419 = vmatpush1.bf16.msra.mxu0 0
        %420 = vmatprep.subr.bf16.mxu0 0
        %421 = vmatpush1.bf16.msra.mxu0 0
        %422 = vmatprep.subr.bf16.mxu0 0
        %423 = vmatpush1.bf16.msra.mxu0 0
        %424 = vmatprep.mubr.bf16.mxu0 0
        %425 = vmatmul.mubr.bf16.gmra.mrb[0].mxu0 %v342
        %v426 = vpop.f32.mrb[0].mxu0
        %v427 = vadd.f32 0.0, %v426
        %v428 = vpop.f32.mrb[0].mxu0
        %v429 = vpop.f32.mrb[0].mxu0
        %v430 = vadd.f32 0.0, %v429
        %v431 = vpop.f32.mrb[0].mxu0
        %432 = vdwg.mxu0
        %v433 = vadd.f32 %v318, %v427
        %v434 = vadd.f32 %v319, %v430
        %435 = vst [vmem:[#allocation2] sm:$0xff] %v433
        %436 = vst [vmem:[#allocation2 + $0x8] sm:$0xff] %v434
        %p437 = scmp.eq.s32.totalorder %s21, 4
        // Predicated region
        $region86: #{generalized_segmentor_forward.5} parent=76 // pred_check
          %p438 = pneg %p437
        $region87: #{generalized_segmentor_forward.5} parent=76 // pred_check_branch
          %440 = sbr.rel (%p438) target = $region89
        $region88: #{generalized_segmentor_forward.5} parent=76 // pred_region
          %v441 = vld [vmem:[#allocation2] sm:$0xff]
          %v442 = vld [vmem:[#allocation2 + $0x8] sm:$0xff]
          %v443 = vld [vmem:[%s2] sm:$0x1]
          %v445 = vlaneseq
          %v446 = vshrl.u32 %v445, 7
          %v447 = vsub.s32 0, %v446
          %v448 = vrot.slane %v443, %v447
          %v450 = vadd.f32 %v441, %v448
          %v451 = vadd.f32 %v442, %v448
          %v452 = vpack.c.bf16 %v451, %v450
          %v453 = vld [vmem:[%s3] sm:$0xf]
          %v454 = vld [vmem:[%s3 + $0x4] sm:$0xf]
          %v455 = vld [vmem:[%s3 + $0x8] sm:$0xf]
          %v456 = vld [vmem:[%s3 + $0xc] sm:$0xf]
          %v457 = vld [vmem:[%s3 + $0x10] sm:$0xf]
          %v458 = vld [vmem:[%s3 + $0x14] sm:$0xf]
          %v459 = vld [vmem:[%s3 + $0x18] sm:$0xf]
          %v460 = vld [vmem:[%s3 + $0x1c] sm:$0xf]
          %v461 = vld [vmem:[%s3 + $0x20] sm:$0xf]
          %v462 = vld [vmem:[%s3 + $0x24] sm:$0xf]
          %v463 = vld [vmem:[%s3 + $0x28] sm:$0xf]
          %v464 = vld [vmem:[%s3 + $0x2c] sm:$0xf]
          %v465 = vld [vmem:[%s3 + $0x30] sm:$0xf]
          %v466 = vld [vmem:[%s3 + $0x34] sm:$0xf]
          %v467 = vld [vmem:[%s3 + $0x38] sm:$0xf]
          %v468 = vld [vmem:[%s3 + $0x3c] sm:$0xf]
          %v469 = vld [vmem:[%s4] sm:$0x1]
          %v471 = vlaneseq
          %v472 = vshrl.u32 %v471, 7
          %v473 = vsub.s32 0, %v472
          %v474 = vrot.slane %v469, %v473
          %v492 = vunpack.c.l.b16 %v453
          %v493 = vunpack.c.l.b16 %v454
          %v494 = vunpack.c.l.b16 %v455
          %v495 = vunpack.c.l.b16 %v456
          %v496 = vunpack.c.l.b16 %v457
          %v497 = vunpack.c.l.b16 %v458
          %v498 = vunpack.c.l.b16 %v459
          %v499 = vunpack.c.l.b16 %v460
          %v500 = vunpack.c.l.b16 %v461
          %v501 = vunpack.c.l.b16 %v462
          %v502 = vunpack.c.l.b16 %v463
          %v503 = vunpack.c.l.b16 %v464
          %v504 = vunpack.c.l.b16 %v465
          %v505 = vunpack.c.l.b16 %v466
          %v506 = vunpack.c.l.b16 %v467
          %v507 = vunpack.c.l.b16 %v468
          %v508 = vpack.c.b16 %v493, %v492
          %v509 = vpack.c.b16 %v495, %v494
          %v510 = vpack.c.b16 %v497, %v496
          %v511 = vpack.c.b16 %v499, %v498
          %v512 = vpack.c.b16 %v501, %v500
          %v513 = vpack.c.b16 %v503, %v502
          %v514 = vpack.c.b16 %v505, %v504
          %v515 = vpack.c.b16 %v507, %v506
          %524 = vmatprep.subr.bf16.mxu0 0
          %525 = vmatpush1.bf16.msra.mxu0 %v508
          %526 = vmatprep.subr.bf16.mxu0 0
          %527 = vmatpush1.bf16.msra.mxu0 %v509
          %528 = vmatprep.subr.bf16.mxu0 0
          %529 = vmatpush1.bf16.msra.mxu0 %v510
          %530 = vmatprep.subr.bf16.mxu0 0
          %531 = vmatpush1.bf16.msra.mxu0 %v511
          %532 = vmatprep.subr.bf16.mxu0 0
          %533 = vmatpush1.bf16.msra.mxu0 %v512
          %534 = vmatprep.subr.bf16.mxu0 0
          %535 = vmatpush1.bf16.msra.mxu0 %v513
          %536 = vmatprep.subr.bf16.mxu0 0
          %537 = vmatpush1.bf16.msra.mxu0 %v514
          %538 = vmatprep.subr.bf16.mxu0 0
          %539 = vmatpush1.bf16.msra.mxu0 %v515
          %540 = vmatprep.subr.bf16.mxu0 0
          %541 = vmatpush1.bf16.msra.mxu0 0
          %542 = vmatprep.subr.bf16.mxu0 0
          %543 = vmatpush1.bf16.msra.mxu0 0
          %544 = vmatprep.subr.bf16.mxu0 0
          %545 = vmatpush1.bf16.msra.mxu0 0
          %546 = vmatprep.subr.bf16.mxu0 0
          %547 = vmatpush1.bf16.msra.mxu0 0
          %548 = vmatprep.subr.bf16.mxu0 0
          %549 = vmatpush1.bf16.msra.mxu0 0
          %550 = vmatprep.subr.bf16.mxu0 0
          %551 = vmatpush1.bf16.msra.mxu0 0
          %552 = vmatprep.subr.bf16.mxu0 0
          %553 = vmatpush1.bf16.msra.mxu0 0
          %554 = vmatprep.subr.bf16.mxu0 0
          %555 = vmatpush1.bf16.msra.mxu0 0
          %556 = vmatprep.mubr.bf16.mxu0 0
          %557 = vmatmul.mubr.bf16.gmra.mrb[0].mxu0 %v452
          %v558 = vpop.f32.mrb[0].mxu0
          %v559 = vadd.f32 %v474, %v558
          %v560 = vpop.f32.mrb[0].mxu0
          %v561 = vpop.f32.mrb[0].mxu0
          %v562 = vadd.f32 %v474, %v561
          %v563 = vpop.f32.mrb[0].mxu0
          %564 = vdwg.mxu0
          %565 = vst [vmem:[%s309] sm:$0xff] %v559
          %566 = vst [vmem:[%s309 + $0x8] sm:$0xff] %v562
        $region89: #{generalized_segmentor_forward.5} parent=76 // pred_fallthru
          _
        %s567 = smul.u32 2, %s20
        %p568 = scmp.lt.s32.totalorder %s567, 3
        %s569 = scalar_select %p568, %s567, 3
        %s570 = smul.addr %s569, 8
        %s571 = scalar_lea.vmem %s5, %s570
        // Predicated region
        $region90: #{generalized_segmentor_forward.5} parent=76 // pred_check
          %p572 = pneg %p163
        $region91: #{generalized_segmentor_forward.5} parent=76 // pred_check_branch
          %574 = sbr.rel (%p572) target = $region93
        $region92: #{generalized_segmentor_forward.5} parent=76 // pred_region
          %s575 = smul.u32 2, %s20
        $region93: #{generalized_segmentor_forward.5} parent=76 // pred_fallthru
          _
      $region77: #{generalized_segmentor_forward.5} parent=5 // pred_fallthru
        _
      %p576 = scmp.le.s32.totalorder 2, %s11
      // Predicated region
      $region94: #{generalized_segmentor_forward.5} parent=5 // pred_check
        %p577 = pneg %p576
      $region95: #{generalized_segmentor_forward.5} parent=5 // pred_check_branch
        %579 = sbr.rel (%p577) target = $region97
      $region96: #{generalized_segmentor_forward.5} parent=5 // pred_region
        %s580 = ssub.s32 %s11, 2
        // Predicated region
        $region98: #{generalized_segmentor_forward.5} parent=96 // pred_check
          %p581 = pneg %p169
        $region99: #{generalized_segmentor_forward.5} parent=96 // pred_check_branch
          %583 = sbr.rel (%p581) target = $region101
        $region100: #{generalized_segmentor_forward.5} parent=96 // pred_region
          %s584 = smul.u32 2, %s22
          %p585 = scmp.lt.s32.totalorder %s584, 3
          %s586 = scalar_select %p585, %s584, 3
          %s587 = smul.addr %s586, 8
          %s588 = scalar_lea.vmem %s5, %s587
        $region101: #{generalized_segmentor_forward.5} parent=96 // pred_fallthru
          _
      $region97: #{generalized_segmentor_forward.5} parent=5 // pred_fallthru
        _
    $region6: #{generalized_segmentor_forward.5} parent=1 // loop_footer
      %s15 = sadd.s32 1, %s11
    $region7: #{generalized_segmentor_forward.5} parent=1 // loop_footer_branch
      %10 = sbr.rel target = $region3
    $region8: #{generalized_segmentor_forward.5} parent=1 // loop_exit
      _

</llo_original>
